<compile_context>
chip_gen: v6e
topology: v6e:2x2x1
jax: 0.10.0
libtpu: 0.0.40
codegen_flags: <defaults>
</compile_context>

<pallas_src>
import numpy as np
import jax
import jax.numpy as jnp
from jax.experimental import pallas as pl
from jax.experimental.pallas import tpu as pltpu

# ---- synthetic hyperparameters (mirror RNN3.__init__) ------------------------
VOCAB = 50        # len(vocab_to_int)
EMBED = 32        # embed_size
HIDDEN = 32       # hidden_size
N_CLASSES = 10    # len(hashtags_vocab_to_int)
BATCH = 2
SEQ = 8

# Packed / padded layout constants (all 128-lane aligned).
VP = 64                 # vocab rows padded to 64 per direction -> paired 128
H2P = 128               # packed hidden lanes: [h_fwd(32) | h_bwd(32) | 0(64)]
GATESP = 3 * H2P        # 384 gate-major cols: [r | z | n], 128-lane groups
C_PAD = 128             # logits padded to a full lane tile


# ---- Pallas kernel -----------------------------------------------------------
def rnn3_kernel(tok_ref, proj_ref, whh_ref, bhhn_ref, wdec_ref, bdec_ref,
                out_ref):
    """Fused embedding gather + bidirectional GRU + decision head.

    tok_ref : (B, T)         int32  token ids (batch-major, as the module sees)
    proj_ref: (2*VP, GATESP) bf16   token -> input-gate table; rows 0:VOCAB are
                                    the fwd dir (embedding @ Wih_f with b_ih and
                                    b_hh[r,z] folded in), rows VP:VP+VOCAB the
                                    bwd dir (embedding @ Wih_b)
    whh_ref : (H2P, GATESP)  bf16   block-diagonal gate-major hidden->gates
    bhhn_ref: (1, H2P)       f32    b_hh of the n gate (stays inside r*(.))
    wdec_ref: (H2P, C_PAD)   bf16   decision weights on [h_fwd | h_bwd]
    bdec_ref: (1, C_PAD)     f32
    out_ref : (B, C_PAD)     f32    lane-dense logits
    """
    b = tok_ref.shape[0]
    tok = tok_ref[...]                                        # (B, T)
    proj = proj_ref[...]                                      # (128, 384)
    whh = whh_ref[...]                                        # (128, 384)
    bhhn = jnp.broadcast_to(bhhn_ref[...], (b, H2P))          # hoisted once
    lanes = jax.lax.broadcasted_iota(jnp.int32, (b, 2 * VP), 1)

    h = jnp.zeros((b, H2P), jnp.float32)
    for s in range(SEQ):                        # fully unrolled, T is static
        tf = tok[:, s:s + 1]                    # token feeding the fwd dir
        tb = tok[:, SEQ - 1 - s:SEQ - s]        # token feeding the bwd dir
        # Paired one-hot: lane tf selects the fwd table row, lane VP+tb the bwd
        # row -> gather + input projection is ONE dot per step (off the h chain).
        sel = (lanes == tf) | (lanes == tb + VP)
        onehot = jnp.where(sel, 1.0, 0.0).astype(jnp.bfloat16)
        gi = jnp.dot(onehot, proj, preferred_element_type=jnp.float32)
        # Recurrent dot: single bf16 MXU pass on the serial critical path.
        gh = jnp.dot(h.astype(jnp.bfloat16), whh,
                     preferred_element_type=jnp.float32)
        rz = jax.nn.sigmoid(gi[:, :2 * H2P] + gh[:, :2 * H2P])  # one EUP slab
        r = rz[:, :H2P]
        z = rz[:, H2P:]
        n = jnp.tanh(gi[:, 2 * H2P:] + r * (gh[:, 2 * H2P:] + bhhn))
        h = (1.0 - z) * n + z * h

    # Decision head on [h_fwd | h_bwd] (padded lanes of h stay zero).
    out_ref[...] = (jnp.dot(h.astype(jnp.bfloat16), wdec_ref[...],
                            preferred_element_type=jnp.float32)
                    + bdec_ref[...]).astype(out_ref.dtype)


# ---- one-time host-side parameter preparation (NOT in the jitted path) -------
def prepare_params(params):
    H = HIDDEN
    emb = np.asarray(params["embedding"], np.float32)         # (V, E)
    w_ih = np.asarray(params["w_ih"], np.float32)             # (2, 3H, E)
    w_hh = np.asarray(params["w_hh"], np.float32)             # (2, 3H, H)
    b_ih = np.asarray(params["b_ih"], np.float32)             # (2, 3H)
    b_hh = np.asarray(params["b_hh"], np.float32)             # (2, 3H)

    wih_f = np.zeros((EMBED, GATESP), np.float32)
    wih_b = np.zeros((EMBED, GATESP), np.float32)
    bias = np.zeros((GATESP,), np.float32)     # b_ih(all) + b_hh(r,z) folded
    whh = np.zeros((H2P, GATESP), np.float32)
    bhhn = np.zeros((1, H2P), np.float32)
    for g in range(3):                          # gates r, z, n
        c0 = g * H2P
        rows = slice(g * H, (g + 1) * H)
        wih_f[:, c0:c0 + H] = w_ih[0, rows, :].T
        wih_b[:, c0 + H:c0 + 2 * H] = w_ih[1, rows, :].T
        whh[:H, c0:c0 + H] = w_hh[0, rows, :].T
        whh[H:2 * H, c0 + H:c0 + 2 * H] = w_hh[1, rows, :].T
        bias[c0:c0 + H] = b_ih[0, rows]
        bias[c0 + H:c0 + 2 * H] = b_ih[1, rows]
        if g < 2:                               # b_hh of r and z folds out
            bias[c0:c0 + H] += b_hh[0, rows]
            bias[c0 + H:c0 + 2 * H] += b_hh[1, rows]
    bhhn[0, :H] = b_hh[0, 2 * H:3 * H]
    bhhn[0, H:2 * H] = b_hh[1, 2 * H:3 * H]

    # Fold the embedding into the input projection: token -> gates tables.
    proj = np.zeros((2 * VP, GATESP), np.float32)
    proj[:VOCAB, :] = emb @ wih_f + bias[None, :]   # bias counted exactly once
    proj[VP:VP + VOCAB, :] = emb @ wih_b

    wdec = np.zeros((H2P, C_PAD), np.float32)
    wdec[:2 * H, :N_CLASSES] = np.asarray(params["w_dec"], np.float32).T
    bdec = np.zeros((1, C_PAD), np.float32)
    bdec[0, :N_CLASSES] = np.asarray(params["b_dec"], np.float32)

    return {
        "proj": jnp.asarray(proj, dtype=jnp.bfloat16),
        "whh": jnp.asarray(whh, dtype=jnp.bfloat16),
        "bhhn": jnp.asarray(bhhn, dtype=jnp.float32),
        "wdec": jnp.asarray(wdec, dtype=jnp.bfloat16),
        "bdec": jnp.asarray(bdec, dtype=jnp.float32),
    }


# ---- jitted forward: just the pallas_call + one lane slice --------------------
@jax.jit
def rnn3_forward(tokens, prep):
    B, T = tokens.shape
    assert T == SEQ
    # Note: single-invocation latency-bound kernel; if BATCH ever scales up,
    # add a batch grid axis with dimension_semantics=("parallel",) so both
    # v7x TensorCores split the work.
    out = pl.pallas_call(
        rnn3_kernel,
        out_shape=jax.ShapeDtypeStruct((B, C_PAD), jnp.float32),
        in_specs=[pl.BlockSpec(memory_space=pltpu.MemorySpace.VMEM)] * 6,
        out_specs=pl.BlockSpec(memory_space=pltpu.MemorySpace.VMEM),
    )(tokens, prep["proj"], prep["whh"], prep["bhhn"], prep["wdec"],
      prep["bdec"])
    return out[:, :N_CLASSES]


# ---- pure-JAX reference (PyTorch GRU semantics) for a sanity check ------------
def rnn3_reference(x_tokens, params):
    embed = jnp.take(params["embedding"], x_tokens, axis=0)      # (B, T, E)
    B = embed.shape[0]
    x_tbe = jnp.transpose(embed, (1, 0, 2))                      # (T, B, E)

    def run_dir(x_seq, d):
        wih, whh = params["w_ih"][d], params["w_hh"][d]
        bih, bhh = params["b_ih"][d], params["b_hh"][d]

        def step(h, x_t):
            gi = x_t @ wih.T + bih
            gh = h @ whh.T + bhh
            i_r, i_z, i_n = jnp.split(gi, 3, axis=-1)
            h_r, h_z, h_n = jnp.split(gh, 3, axis=-1)
            r = jax.nn.sigmoid(i_r + h_r)
            z = jax.nn.sigmoid(i_z + h_z)
            n = jnp.tanh(i_n + r * h_n)
            return (1.0 - z) * n + z * h, None

        h0 = jnp.zeros((B, HIDDEN), jnp.float32)
        hT, _ = jax.lax.scan(step, h0, x_seq)
        return hT

    h_fwd = run_dir(x_tbe, 0)
    h_bwd = run_dir(jnp.flip(x_tbe, axis=0), 1)
    h_cat = jnp.concatenate([h_fwd, h_bwd], axis=-1)
    return h_cat @ params["w_dec"].T + params["b_dec"]


# ---- deterministic parameter init ---------------------------------------------
def init_params(key):
    ks = jax.random.split(key, 7)
    scale = 0.1
    return {
        "embedding": scale * jax.random.normal(ks[0], (VOCAB, EMBED), jnp.float32),
        "w_ih": scale * jax.random.normal(ks[1], (2, 3 * HIDDEN, EMBED), jnp.float32),
        "w_hh": scale * jax.random.normal(ks[2], (2, 3 * HIDDEN, HIDDEN), jnp.float32),
        "b_ih": scale * jax.random.normal(ks[3], (2, 3 * HIDDEN), jnp.float32),
        "b_hh": scale * jax.random.normal(ks[4], (2, 3 * HIDDEN), jnp.float32),
        "w_dec": scale * jax.random.normal(ks[5], (N_CLASSES, 2 * HIDDEN), jnp.float32),
        "b_dec": scale * jax.random.normal(ks[6], (N_CLASSES,), jnp.float32),
    }


if __name__ == "__main__":
    key = jax.random.PRNGKey(0)
    pkey, xkey = jax.random.split(key)
    params = init_params(pkey)
    prep = prepare_params(params)          # one-time host-side re-layout
    tokens = jax.random.randint(xkey, (BATCH, SEQ), 0, VOCAB, dtype=jnp.int32)

    out = jax.block_until_ready(rnn3_forward(tokens, prep))
    ref = jax.block_until_ready(rnn3_reference(tokens, params))
    assert out.shape == (BATCH, N_CLASSES)
    # bf16 MXU operands inside the kernel -> relaxed tolerance vs f32 reference.
    assert jnp.allclose(out, ref, atol=2e-2, rtol=2e-2), (out, ref)
    print("KERNEL_OK")
</pallas_src>

<mosaic_0001>
module attributes {stable_mosaic.version = 11 : i64} {
  func.func @rnn3_kernel(%arg0: memref<2x8xi32, #tpu.memory_space<vmem>>, %arg1: memref<128x384xbf16, #tpu.memory_space<vmem>>, %arg2: memref<128x384xbf16, #tpu.memory_space<vmem>>, %arg3: memref<1x128xf32, #tpu.memory_space<vmem>>, %arg4: memref<128x128xbf16, #tpu.memory_space<vmem>>, %arg5: memref<1x128xf32, #tpu.memory_space<vmem>>, %arg6: memref<2x128xf32, #tpu.memory_space<vmem>>) attributes {dimension_semantics = [], scalar_prefetch = 0 : i64, scratch_operands = 0 : i64, tpu.core_type = #tpu.core_type<tc>} {
    %c0 = arith.constant 0 : index
    %c0_0 = arith.constant 0 : index
    %0 = vector.load %arg0[%c0, %c0_0] : memref<2x8xi32, #tpu.memory_space<vmem>>, vector<2x8xi32>
    %c0_1 = arith.constant 0 : index
    %c0_2 = arith.constant 0 : index
    %1 = vector.load %arg1[%c0_1, %c0_2] : memref<128x384xbf16, #tpu.memory_space<vmem>>, vector<128x384xbf16>
    %c0_3 = arith.constant 0 : index
    %c0_4 = arith.constant 0 : index
    %2 = vector.load %arg2[%c0_3, %c0_4] : memref<128x384xbf16, #tpu.memory_space<vmem>>, vector<128x384xbf16>
    %c0_5 = arith.constant 0 : index
    %c0_6 = arith.constant 0 : index
    %3 = vector.load %arg3[%c0_5, %c0_6] : memref<1x128xf32, #tpu.memory_space<vmem>>, vector<1x128xf32>
    %4 = vector.shape_cast %3 : vector<1x128xf32> to vector<1x128xf32>
    %5 = vector.broadcast %4 : vector<1x128xf32> to vector<2x128xf32>
    %6 = tpu.iota {dimensions = array<i32: 1>} : vector<2x128xi32>
    %cst = arith.constant 0.000000e+00 : f32
    %7 = vector.broadcast %cst : f32 to vector<2x128xf32>
    %8 = vector.extract_strided_slice %0 {offsets = [0, 0], sizes = [2, 1], strides = [1, 1]} : vector<2x8xi32> to vector<2x1xi32>
    %9 = vector.extract_strided_slice %0 {offsets = [0, 7], sizes = [2, 1], strides = [1, 1]} : vector<2x8xi32> to vector<2x1xi32>
    %10 = vector.broadcast %8 : vector<2x1xi32> to vector<2x128xi32>
    %11 = arith.cmpi eq, %6, %10 : vector<2x128xi32>
    %c64_i32 = arith.constant 64 : i32
    %12 = vector.broadcast %c64_i32 : i32 to vector<2x1xi32>
    %13 = arith.addi %9, %12 : vector<2x1xi32>
    %14 = vector.broadcast %13 : vector<2x1xi32> to vector<2x128xi32>
    %15 = arith.cmpi eq, %6, %14 : vector<2x128xi32>
    %16 = arith.ori %11, %15 : vector<2x128xi1>
    %cst_7 = arith.constant 1.000000e+00 : f32
    %cst_8 = arith.constant 0.000000e+00 : f32
    %17 = vector.broadcast %cst_7 : f32 to vector<2x128xf32>
    %18 = vector.broadcast %cst_8 : f32 to vector<2x128xf32>
    %19 = arith.select %16, %17, %18 : vector<2x128xi1>, vector<2x128xf32>
    %20 = arith.truncf %19 : vector<2x128xf32> to vector<2x128xbf16>
    %cst_9 = arith.constant dense<0.000000e+00> : vector<2x384xf32>
    %21 = tpu.matmul %20, %1, %cst_9 {dimension_numbers = #tpu.dot_dimension_numbers<[1], [0], [0], [1], [0, 0, 1, 1], [], []>} : vector<2x128xbf16>, vector<128x384xbf16>, vector<2x384xf32> -> vector<2x384xf32>
    %22 = arith.truncf %7 : vector<2x128xf32> to vector<2x128xbf16>
    %cst_10 = arith.constant dense<0.000000e+00> : vector<2x384xf32>
    %23 = tpu.matmul %22, %2, %cst_10 {dimension_numbers = #tpu.dot_dimension_numbers<[1], [0], [0], [1], [0, 0, 1, 1], [], []>} : vector<2x128xbf16>, vector<128x384xbf16>, vector<2x384xf32> -> vector<2x384xf32>
    %24 = vector.extract_strided_slice %21 {offsets = [0, 0], sizes = [2, 256], strides = [1, 1]} : vector<2x384xf32> to vector<2x256xf32>
    %25 = vector.extract_strided_slice %23 {offsets = [0, 0], sizes = [2, 256], strides = [1, 1]} : vector<2x384xf32> to vector<2x256xf32>
    %26 = arith.addf %24, %25 : vector<2x256xf32>
    %27 = arith.negf %26 : vector<2x256xf32>
    %28 = math.exp %27 : vector<2x256xf32>
    %cst_11 = arith.constant 1.000000e+00 : f32
    %29 = vector.broadcast %cst_11 : f32 to vector<2x256xf32>
    %30 = arith.addf %29, %28 : vector<2x256xf32>
    %31 = arith.divf %29, %30 : vector<2x256xf32>
    %32 = vector.extract_strided_slice %31 {offsets = [0, 0], sizes = [2, 128], strides = [1, 1]} : vector<2x256xf32> to vector<2x128xf32>
    %33 = vector.extract_strided_slice %31 {offsets = [0, 128], sizes = [2, 128], strides = [1, 1]} : vector<2x256xf32> to vector<2x128xf32>
    %34 = vector.extract_strided_slice %21 {offsets = [0, 256], sizes = [2, 128], strides = [1, 1]} : vector<2x384xf32> to vector<2x128xf32>
    %35 = vector.extract_strided_slice %23 {offsets = [0, 256], sizes = [2, 128], strides = [1, 1]} : vector<2x384xf32> to vector<2x128xf32>
    %36 = arith.addf %35, %5 : vector<2x128xf32>
    %37 = arith.mulf %32, %36 : vector<2x128xf32>
    %38 = arith.addf %34, %37 : vector<2x128xf32>
    %39 = math.tanh %38 : vector<2x128xf32>
    %cst_12 = arith.constant 1.000000e+00 : f32
    %40 = vector.broadcast %cst_12 : f32 to vector<2x128xf32>
    %41 = arith.subf %40, %33 : vector<2x128xf32>
    %42 = arith.mulf %41, %39 : vector<2x128xf32>
    %43 = arith.mulf %33, %7 : vector<2x128xf32>
    %44 = arith.addf %42, %43 : vector<2x128xf32>
    %45 = vector.extract_strided_slice %0 {offsets = [0, 1], sizes = [2, 1], strides = [1, 1]} : vector<2x8xi32> to vector<2x1xi32>
    %46 = vector.extract_strided_slice %0 {offsets = [0, 6], sizes = [2, 1], strides = [1, 1]} : vector<2x8xi32> to vector<2x1xi32>
    %47 = vector.broadcast %45 : vector<2x1xi32> to vector<2x128xi32>
    %48 = arith.cmpi eq, %6, %47 : vector<2x128xi32>
    %c64_i32_13 = arith.constant 64 : i32
    %49 = vector.broadcast %c64_i32_13 : i32 to vector<2x1xi32>
    %50 = arith.addi %46, %49 : vector<2x1xi32>
    %51 = vector.broadcast %50 : vector<2x1xi32> to vector<2x128xi32>
    %52 = arith.cmpi eq, %6, %51 : vector<2x128xi32>
    %53 = arith.ori %48, %52 : vector<2x128xi1>
    %cst_14 = arith.constant 1.000000e+00 : f32
    %cst_15 = arith.constant 0.000000e+00 : f32
    %54 = vector.broadcast %cst_14 : f32 to vector<2x128xf32>
    %55 = vector.broadcast %cst_15 : f32 to vector<2x128xf32>
    %56 = arith.select %53, %54, %55 : vector<2x128xi1>, vector<2x128xf32>
    %57 = arith.truncf %56 : vector<2x128xf32> to vector<2x128xbf16>
    %cst_16 = arith.constant dense<0.000000e+00> : vector<2x384xf32>
    %58 = tpu.matmul %57, %1, %cst_16 {dimension_numbers = #tpu.dot_dimension_numbers<[1], [0], [0], [1], [0, 0, 1, 1], [], []>} : vector<2x128xbf16>, vector<128x384xbf16>, vector<2x384xf32> -> vector<2x384xf32>
    %59 = arith.truncf %44 : vector<2x128xf32> to vector<2x128xbf16>
    %cst_17 = arith.constant dense<0.000000e+00> : vector<2x384xf32>
    %60 = tpu.matmul %59, %2, %cst_17 {dimension_numbers = #tpu.dot_dimension_numbers<[1], [0], [0], [1], [0, 0, 1, 1], [], []>} : vector<2x128xbf16>, vector<128x384xbf16>, vector<2x384xf32> -> vector<2x384xf32>
    %61 = vector.extract_strided_slice %58 {offsets = [0, 0], sizes = [2, 256], strides = [1, 1]} : vector<2x384xf32> to vector<2x256xf32>
    %62 = vector.extract_strided_slice %60 {offsets = [0, 0], sizes = [2, 256], strides = [1, 1]} : vector<2x384xf32> to vector<2x256xf32>
    %63 = arith.addf %61, %62 : vector<2x256xf32>
    %64 = arith.negf %63 : vector<2x256xf32>
    %65 = math.exp %64 : vector<2x256xf32>
    %cst_18 = arith.constant 1.000000e+00 : f32
    %66 = vector.broadcast %cst_18 : f32 to vector<2x256xf32>
    %67 = arith.addf %66, %65 : vector<2x256xf32>
    %68 = arith.divf %66, %67 : vector<2x256xf32>
    %69 = vector.extract_strided_slice %68 {offsets = [0, 0], sizes = [2, 128], strides = [1, 1]} : vector<2x256xf32> to vector<2x128xf32>
    %70 = vector.extract_strided_slice %68 {offsets = [0, 128], sizes = [2, 128], strides = [1, 1]} : vector<2x256xf32> to vector<2x128xf32>
    %71 = vector.extract_strided_slice %58 {offsets = [0, 256], sizes = [2, 128], strides = [1, 1]} : vector<2x384xf32> to vector<2x128xf32>
    %72 = vector.extract_strided_slice %60 {offsets = [0, 256], sizes = [2, 128], strides = [1, 1]} : vector<2x384xf32> to vector<2x128xf32>
    %73 = arith.addf %72, %5 : vector<2x128xf32>
    %74 = arith.mulf %69, %73 : vector<2x128xf32>
    %75 = arith.addf %71, %74 : vector<2x128xf32>
    %76 = math.tanh %75 : vector<2x128xf32>
    %cst_19 = arith.constant 1.000000e+00 : f32
    %77 = vector.broadcast %cst_19 : f32 to vector<2x128xf32>
    %78 = arith.subf %77, %70 : vector<2x128xf32>
    %79 = arith.mulf %78, %76 : vector<2x128xf32>
    %80 = arith.mulf %70, %44 : vector<2x128xf32>
    %81 = arith.addf %79, %80 : vector<2x128xf32>
    %82 = vector.extract_strided_slice %0 {offsets = [0, 2], sizes = [2, 1], strides = [1, 1]} : vector<2x8xi32> to vector<2x1xi32>
    %83 = vector.extract_strided_slice %0 {offsets = [0, 5], sizes = [2, 1], strides = [1, 1]} : vector<2x8xi32> to vector<2x1xi32>
    %84 = vector.broadcast %82 : vector<2x1xi32> to vector<2x128xi32>
    %85 = arith.cmpi eq, %6, %84 : vector<2x128xi32>
    %c64_i32_20 = arith.constant 64 : i32
    %86 = vector.broadcast %c64_i32_20 : i32 to vector<2x1xi32>
    %87 = arith.addi %83, %86 : vector<2x1xi32>
    %88 = vector.broadcast %87 : vector<2x1xi32> to vector<2x128xi32>
    %89 = arith.cmpi eq, %6, %88 : vector<2x128xi32>
    %90 = arith.ori %85, %89 : vector<2x128xi1>
    %cst_21 = arith.constant 1.000000e+00 : f32
    %cst_22 = arith.constant 0.000000e+00 : f32
    %91 = vector.broadcast %cst_21 : f32 to vector<2x128xf32>
    %92 = vector.broadcast %cst_22 : f32 to vector<2x128xf32>
    %93 = arith.select %90, %91, %92 : vector<2x128xi1>, vector<2x128xf32>
    %94 = arith.truncf %93 : vector<2x128xf32> to vector<2x128xbf16>
    %cst_23 = arith.constant dense<0.000000e+00> : vector<2x384xf32>
    %95 = tpu.matmul %94, %1, %cst_23 {dimension_numbers = #tpu.dot_dimension_numbers<[1], [0], [0], [1], [0, 0, 1, 1], [], []>} : vector<2x128xbf16>, vector<128x384xbf16>, vector<2x384xf32> -> vector<2x384xf32>
    %96 = arith.truncf %81 : vector<2x128xf32> to vector<2x128xbf16>
    %cst_24 = arith.constant dense<0.000000e+00> : vector<2x384xf32>
    %97 = tpu.matmul %96, %2, %cst_24 {dimension_numbers = #tpu.dot_dimension_numbers<[1], [0], [0], [1], [0, 0, 1, 1], [], []>} : vector<2x128xbf16>, vector<128x384xbf16>, vector<2x384xf32> -> vector<2x384xf32>
    %98 = vector.extract_strided_slice %95 {offsets = [0, 0], sizes = [2, 256], strides = [1, 1]} : vector<2x384xf32> to vector<2x256xf32>
    %99 = vector.extract_strided_slice %97 {offsets = [0, 0], sizes = [2, 256], strides = [1, 1]} : vector<2x384xf32> to vector<2x256xf32>
    %100 = arith.addf %98, %99 : vector<2x256xf32>
    %101 = arith.negf %100 : vector<2x256xf32>
    %102 = math.exp %101 : vector<2x256xf32>
    %cst_25 = arith.constant 1.000000e+00 : f32
    %103 = vector.broadcast %cst_25 : f32 to vector<2x256xf32>
    %104 = arith.addf %103, %102 : vector<2x256xf32>
    %105 = arith.divf %103, %104 : vector<2x256xf32>
    %106 = vector.extract_strided_slice %105 {offsets = [0, 0], sizes = [2, 128], strides = [1, 1]} : vector<2x256xf32> to vector<2x128xf32>
    %107 = vector.extract_strided_slice %105 {offsets = [0, 128], sizes = [2, 128], strides = [1, 1]} : vector<2x256xf32> to vector<2x128xf32>
    %108 = vector.extract_strided_slice %95 {offsets = [0, 256], sizes = [2, 128], strides = [1, 1]} : vector<2x384xf32> to vector<2x128xf32>
    %109 = vector.extract_strided_slice %97 {offsets = [0, 256], sizes = [2, 128], strides = [1, 1]} : vector<2x384xf32> to vector<2x128xf32>
    %110 = arith.addf %109, %5 : vector<2x128xf32>
    %111 = arith.mulf %106, %110 : vector<2x128xf32>
    %112 = arith.addf %108, %111 : vector<2x128xf32>
    %113 = math.tanh %112 : vector<2x128xf32>
    %cst_26 = arith.constant 1.000000e+00 : f32
    %114 = vector.broadcast %cst_26 : f32 to vector<2x128xf32>
    %115 = arith.subf %114, %107 : vector<2x128xf32>
    %116 = arith.mulf %115, %113 : vector<2x128xf32>
    %117 = arith.mulf %107, %81 : vector<2x128xf32>
    %118 = arith.addf %116, %117 : vector<2x128xf32>
    %119 = vector.extract_strided_slice %0 {offsets = [0, 3], sizes = [2, 1], strides = [1, 1]} : vector<2x8xi32> to vector<2x1xi32>
    %120 = vector.extract_strided_slice %0 {offsets = [0, 4], sizes = [2, 1], strides = [1, 1]} : vector<2x8xi32> to vector<2x1xi32>
    %121 = vector.broadcast %119 : vector<2x1xi32> to vector<2x128xi32>
    %122 = arith.cmpi eq, %6, %121 : vector<2x128xi32>
    %c64_i32_27 = arith.constant 64 : i32
    %123 = vector.broadcast %c64_i32_27 : i32 to vector<2x1xi32>
    %124 = arith.addi %120, %123 : vector<2x1xi32>
    %125 = vector.broadcast %124 : vector<2x1xi32> to vector<2x128xi32>
    %126 = arith.cmpi eq, %6, %125 : vector<2x128xi32>
    %127 = arith.ori %122, %126 : vector<2x128xi1>
    %cst_28 = arith.constant 1.000000e+00 : f32
    %cst_29 = arith.constant 0.000000e+00 : f32
    %128 = vector.broadcast %cst_28 : f32 to vector<2x128xf32>
    %129 = vector.broadcast %cst_29 : f32 to vector<2x128xf32>
    %130 = arith.select %127, %128, %129 : vector<2x128xi1>, vector<2x128xf32>
    %131 = arith.truncf %130 : vector<2x128xf32> to vector<2x128xbf16>
    %cst_30 = arith.constant dense<0.000000e+00> : vector<2x384xf32>
    %132 = tpu.matmul %131, %1, %cst_30 {dimension_numbers = #tpu.dot_dimension_numbers<[1], [0], [0], [1], [0, 0, 1, 1], [], []>} : vector<2x128xbf16>, vector<128x384xbf16>, vector<2x384xf32> -> vector<2x384xf32>
    %133 = arith.truncf %118 : vector<2x128xf32> to vector<2x128xbf16>
    %cst_31 = arith.constant dense<0.000000e+00> : vector<2x384xf32>
    %134 = tpu.matmul %133, %2, %cst_31 {dimension_numbers = #tpu.dot_dimension_numbers<[1], [0], [0], [1], [0, 0, 1, 1], [], []>} : vector<2x128xbf16>, vector<128x384xbf16>, vector<2x384xf32> -> vector<2x384xf32>
    %135 = vector.extract_strided_slice %132 {offsets = [0, 0], sizes = [2, 256], strides = [1, 1]} : vector<2x384xf32> to vector<2x256xf32>
    %136 = vector.extract_strided_slice %134 {offsets = [0, 0], sizes = [2, 256], strides = [1, 1]} : vector<2x384xf32> to vector<2x256xf32>
    %137 = arith.addf %135, %136 : vector<2x256xf32>
    %138 = arith.negf %137 : vector<2x256xf32>
    %139 = math.exp %138 : vector<2x256xf32>
    %cst_32 = arith.constant 1.000000e+00 : f32
    %140 = vector.broadcast %cst_32 : f32 to vector<2x256xf32>
    %141 = arith.addf %140, %139 : vector<2x256xf32>
    %142 = arith.divf %140, %141 : vector<2x256xf32>
    %143 = vector.extract_strided_slice %142 {offsets = [0, 0], sizes = [2, 128], strides = [1, 1]} : vector<2x256xf32> to vector<2x128xf32>
    %144 = vector.extract_strided_slice %142 {offsets = [0, 128], sizes = [2, 128], strides = [1, 1]} : vector<2x256xf32> to vector<2x128xf32>
    %145 = vector.extract_strided_slice %132 {offsets = [0, 256], sizes = [2, 128], strides = [1, 1]} : vector<2x384xf32> to vector<2x128xf32>
    %146 = vector.extract_strided_slice %134 {offsets = [0, 256], sizes = [2, 128], strides = [1, 1]} : vector<2x384xf32> to vector<2x128xf32>
    %147 = arith.addf %146, %5 : vector<2x128xf32>
    %148 = arith.mulf %143, %147 : vector<2x128xf32>
    %149 = arith.addf %145, %148 : vector<2x128xf32>
    %150 = math.tanh %149 : vector<2x128xf32>
    %cst_33 = arith.constant 1.000000e+00 : f32
    %151 = vector.broadcast %cst_33 : f32 to vector<2x128xf32>
    %152 = arith.subf %151, %144 : vector<2x128xf32>
    %153 = arith.mulf %152, %150 : vector<2x128xf32>
    %154 = arith.mulf %144, %118 : vector<2x128xf32>
    %155 = arith.addf %153, %154 : vector<2x128xf32>
    %156 = vector.extract_strided_slice %0 {offsets = [0, 4], sizes = [2, 1], strides = [1, 1]} : vector<2x8xi32> to vector<2x1xi32>
    %157 = vector.extract_strided_slice %0 {offsets = [0, 3], sizes = [2, 1], strides = [1, 1]} : vector<2x8xi32> to vector<2x1xi32>
    %158 = vector.broadcast %156 : vector<2x1xi32> to vector<2x128xi32>
    %159 = arith.cmpi eq, %6, %158 : vector<2x128xi32>
    %c64_i32_34 = arith.constant 64 : i32
    %160 = vector.broadcast %c64_i32_34 : i32 to vector<2x1xi32>
    %161 = arith.addi %157, %160 : vector<2x1xi32>
    %162 = vector.broadcast %161 : vector<2x1xi32> to vector<2x128xi32>
    %163 = arith.cmpi eq, %6, %162 : vector<2x128xi32>
    %164 = arith.ori %159, %163 : vector<2x128xi1>
    %cst_35 = arith.constant 1.000000e+00 : f32
    %cst_36 = arith.constant 0.000000e+00 : f32
    %165 = vector.broadcast %cst_35 : f32 to vector<2x128xf32>
    %166 = vector.broadcast %cst_36 : f32 to vector<2x128xf32>
    %167 = arith.select %164, %165, %166 : vector<2x128xi1>, vector<2x128xf32>
    %168 = arith.truncf %167 : vector<2x128xf32> to vector<2x128xbf16>
    %cst_37 = arith.constant dense<0.000000e+00> : vector<2x384xf32>
    %169 = tpu.matmul %168, %1, %cst_37 {dimension_numbers = #tpu.dot_dimension_numbers<[1], [0], [0], [1], [0, 0, 1, 1], [], []>} : vector<2x128xbf16>, vector<128x384xbf16>, vector<2x384xf32> -> vector<2x384xf32>
    %170 = arith.truncf %155 : vector<2x128xf32> to vector<2x128xbf16>
    %cst_38 = arith.constant dense<0.000000e+00> : vector<2x384xf32>
    %171 = tpu.matmul %170, %2, %cst_38 {dimension_numbers = #tpu.dot_dimension_numbers<[1], [0], [0], [1], [0, 0, 1, 1], [], []>} : vector<2x128xbf16>, vector<128x384xbf16>, vector<2x384xf32> -> vector<2x384xf32>
    %172 = vector.extract_strided_slice %169 {offsets = [0, 0], sizes = [2, 256], strides = [1, 1]} : vector<2x384xf32> to vector<2x256xf32>
    %173 = vector.extract_strided_slice %171 {offsets = [0, 0], sizes = [2, 256], strides = [1, 1]} : vector<2x384xf32> to vector<2x256xf32>
    %174 = arith.addf %172, %173 : vector<2x256xf32>
    %175 = arith.negf %174 : vector<2x256xf32>
    %176 = math.exp %175 : vector<2x256xf32>
    %cst_39 = arith.constant 1.000000e+00 : f32
    %177 = vector.broadcast %cst_39 : f32 to vector<2x256xf32>
    %178 = arith.addf %177, %176 : vector<2x256xf32>
    %179 = arith.divf %177, %178 : vector<2x256xf32>
    %180 = vector.extract_strided_slice %179 {offsets = [0, 0], sizes = [2, 128], strides = [1, 1]} : vector<2x256xf32> to vector<2x128xf32>
    %181 = vector.extract_strided_slice %179 {offsets = [0, 128], sizes = [2, 128], strides = [1, 1]} : vector<2x256xf32> to vector<2x128xf32>
    %182 = vector.extract_strided_slice %169 {offsets = [0, 256], sizes = [2, 128], strides = [1, 1]} : vector<2x384xf32> to vector<2x128xf32>
    %183 = vector.extract_strided_slice %171 {offsets = [0, 256], sizes = [2, 128], strides = [1, 1]} : vector<2x384xf32> to vector<2x128xf32>
    %184 = arith.addf %183, %5 : vector<2x128xf32>
    %185 = arith.mulf %180, %184 : vector<2x128xf32>
    %186 = arith.addf %182, %185 : vector<2x128xf32>
    %187 = math.tanh %186 : vector<2x128xf32>
    %cst_40 = arith.constant 1.000000e+00 : f32
    %188 = vector.broadcast %cst_40 : f32 to vector<2x128xf32>
    %189 = arith.subf %188, %181 : vector<2x128xf32>
    %190 = arith.mulf %189, %187 : vector<2x128xf32>
    %191 = arith.mulf %181, %155 : vector<2x128xf32>
    %192 = arith.addf %190, %191 : vector<2x128xf32>
    %193 = vector.extract_strided_slice %0 {offsets = [0, 5], sizes = [2, 1], strides = [1, 1]} : vector<2x8xi32> to vector<2x1xi32>
    %194 = vector.extract_strided_slice %0 {offsets = [0, 2], sizes = [2, 1], strides = [1, 1]} : vector<2x8xi32> to vector<2x1xi32>
    %195 = vector.broadcast %193 : vector<2x1xi32> to vector<2x128xi32>
    %196 = arith.cmpi eq, %6, %195 : vector<2x128xi32>
    %c64_i32_41 = arith.constant 64 : i32
    %197 = vector.broadcast %c64_i32_41 : i32 to vector<2x1xi32>
    %198 = arith.addi %194, %197 : vector<2x1xi32>
    %199 = vector.broadcast %198 : vector<2x1xi32> to vector<2x128xi32>
    %200 = arith.cmpi eq, %6, %199 : vector<2x128xi32>
    %201 = arith.ori %196, %200 : vector<2x128xi1>
    %cst_42 = arith.constant 1.000000e+00 : f32
    %cst_43 = arith.constant 0.000000e+00 : f32
    %202 = vector.broadcast %cst_42 : f32 to vector<2x128xf32>
    %203 = vector.broadcast %cst_43 : f32 to vector<2x128xf32>
    %204 = arith.select %201, %202, %203 : vector<2x128xi1>, vector<2x128xf32>
    %205 = arith.truncf %204 : vector<2x128xf32> to vector<2x128xbf16>
    %cst_44 = arith.constant dense<0.000000e+00> : vector<2x384xf32>
    %206 = tpu.matmul %205, %1, %cst_44 {dimension_numbers = #tpu.dot_dimension_numbers<[1], [0], [0], [1], [0, 0, 1, 1], [], []>} : vector<2x128xbf16>, vector<128x384xbf16>, vector<2x384xf32> -> vector<2x384xf32>
    %207 = arith.truncf %192 : vector<2x128xf32> to vector<2x128xbf16>
    %cst_45 = arith.constant dense<0.000000e+00> : vector<2x384xf32>
    %208 = tpu.matmul %207, %2, %cst_45 {dimension_numbers = #tpu.dot_dimension_numbers<[1], [0], [0], [1], [0, 0, 1, 1], [], []>} : vector<2x128xbf16>, vector<128x384xbf16>, vector<2x384xf32> -> vector<2x384xf32>
    %209 = vector.extract_strided_slice %206 {offsets = [0, 0], sizes = [2, 256], strides = [1, 1]} : vector<2x384xf32> to vector<2x256xf32>
    %210 = vector.extract_strided_slice %208 {offsets = [0, 0], sizes = [2, 256], strides = [1, 1]} : vector<2x384xf32> to vector<2x256xf32>
    %211 = arith.addf %209, %210 : vector<2x256xf32>
    %212 = arith.negf %211 : vector<2x256xf32>
    %213 = math.exp %212 : vector<2x256xf32>
    %cst_46 = arith.constant 1.000000e+00 : f32
    %214 = vector.broadcast %cst_46 : f32 to vector<2x256xf32>
    %215 = arith.addf %214, %213 : vector<2x256xf32>
    %216 = arith.divf %214, %215 : vector<2x256xf32>
    %217 = vector.extract_strided_slice %216 {offsets = [0, 0], sizes = [2, 128], strides = [1, 1]} : vector<2x256xf32> to vector<2x128xf32>
    %218 = vector.extract_strided_slice %216 {offsets = [0, 128], sizes = [2, 128], strides = [1, 1]} : vector<2x256xf32> to vector<2x128xf32>
    %219 = vector.extract_strided_slice %206 {offsets = [0, 256], sizes = [2, 128], strides = [1, 1]} : vector<2x384xf32> to vector<2x128xf32>
    %220 = vector.extract_strided_slice %208 {offsets = [0, 256], sizes = [2, 128], strides = [1, 1]} : vector<2x384xf32> to vector<2x128xf32>
    %221 = arith.addf %220, %5 : vector<2x128xf32>
    %222 = arith.mulf %217, %221 : vector<2x128xf32>
    %223 = arith.addf %219, %222 : vector<2x128xf32>
    %224 = math.tanh %223 : vector<2x128xf32>
    %cst_47 = arith.constant 1.000000e+00 : f32
    %225 = vector.broadcast %cst_47 : f32 to vector<2x128xf32>
    %226 = arith.subf %225, %218 : vector<2x128xf32>
    %227 = arith.mulf %226, %224 : vector<2x128xf32>
    %228 = arith.mulf %218, %192 : vector<2x128xf32>
    %229 = arith.addf %227, %228 : vector<2x128xf32>
    %230 = vector.extract_strided_slice %0 {offsets = [0, 6], sizes = [2, 1], strides = [1, 1]} : vector<2x8xi32> to vector<2x1xi32>
    %231 = vector.extract_strided_slice %0 {offsets = [0, 1], sizes = [2, 1], strides = [1, 1]} : vector<2x8xi32> to vector<2x1xi32>
    %232 = vector.broadcast %230 : vector<2x1xi32> to vector<2x128xi32>
    %233 = arith.cmpi eq, %6, %232 : vector<2x128xi32>
    %c64_i32_48 = arith.constant 64 : i32
    %234 = vector.broadcast %c64_i32_48 : i32 to vector<2x1xi32>
    %235 = arith.addi %231, %234 : vector<2x1xi32>
    %236 = vector.broadcast %235 : vector<2x1xi32> to vector<2x128xi32>
    %237 = arith.cmpi eq, %6, %236 : vector<2x128xi32>
    %238 = arith.ori %233, %237 : vector<2x128xi1>
    %cst_49 = arith.constant 1.000000e+00 : f32
    %cst_50 = arith.constant 0.000000e+00 : f32
    %239 = vector.broadcast %cst_49 : f32 to vector<2x128xf32>
    %240 = vector.broadcast %cst_50 : f32 to vector<2x128xf32>
    %241 = arith.select %238, %239, %240 : vector<2x128xi1>, vector<2x128xf32>
    %242 = arith.truncf %241 : vector<2x128xf32> to vector<2x128xbf16>
    %cst_51 = arith.constant dense<0.000000e+00> : vector<2x384xf32>
    %243 = tpu.matmul %242, %1, %cst_51 {dimension_numbers = #tpu.dot_dimension_numbers<[1], [0], [0], [1], [0, 0, 1, 1], [], []>} : vector<2x128xbf16>, vector<128x384xbf16>, vector<2x384xf32> -> vector<2x384xf32>
    %244 = arith.truncf %229 : vector<2x128xf32> to vector<2x128xbf16>
    %cst_52 = arith.constant dense<0.000000e+00> : vector<2x384xf32>
    %245 = tpu.matmul %244, %2, %cst_52 {dimension_numbers = #tpu.dot_dimension_numbers<[1], [0], [0], [1], [0, 0, 1, 1], [], []>} : vector<2x128xbf16>, vector<128x384xbf16>, vector<2x384xf32> -> vector<2x384xf32>
    %246 = vector.extract_strided_slice %243 {offsets = [0, 0], sizes = [2, 256], strides = [1, 1]} : vector<2x384xf32> to vector<2x256xf32>
    %247 = vector.extract_strided_slice %245 {offsets = [0, 0], sizes = [2, 256], strides = [1, 1]} : vector<2x384xf32> to vector<2x256xf32>
    %248 = arith.addf %246, %247 : vector<2x256xf32>
    %249 = arith.negf %248 : vector<2x256xf32>
    %250 = math.exp %249 : vector<2x256xf32>
    %cst_53 = arith.constant 1.000000e+00 : f32
    %251 = vector.broadcast %cst_53 : f32 to vector<2x256xf32>
    %252 = arith.addf %251, %250 : vector<2x256xf32>
    %253 = arith.divf %251, %252 : vector<2x256xf32>
    %254 = vector.extract_strided_slice %253 {offsets = [0, 0], sizes = [2, 128], strides = [1, 1]} : vector<2x256xf32> to vector<2x128xf32>
    %255 = vector.extract_strided_slice %253 {offsets = [0, 128], sizes = [2, 128], strides = [1, 1]} : vector<2x256xf32> to vector<2x128xf32>
    %256 = vector.extract_strided_slice %243 {offsets = [0, 256], sizes = [2, 128], strides = [1, 1]} : vector<2x384xf32> to vector<2x128xf32>
    %257 = vector.extract_strided_slice %245 {offsets = [0, 256], sizes = [2, 128], strides = [1, 1]} : vector<2x384xf32> to vector<2x128xf32>
    %258 = arith.addf %257, %5 : vector<2x128xf32>
    %259 = arith.mulf %254, %258 : vector<2x128xf32>
    %260 = arith.addf %256, %259 : vector<2x128xf32>
    %261 = math.tanh %260 : vector<2x128xf32>
    %cst_54 = arith.constant 1.000000e+00 : f32
    %262 = vector.broadcast %cst_54 : f32 to vector<2x128xf32>
    %263 = arith.subf %262, %255 : vector<2x128xf32>
    %264 = arith.mulf %263, %261 : vector<2x128xf32>
    %265 = arith.mulf %255, %229 : vector<2x128xf32>
    %266 = arith.addf %264, %265 : vector<2x128xf32>
    %267 = vector.extract_strided_slice %0 {offsets = [0, 7], sizes = [2, 1], strides = [1, 1]} : vector<2x8xi32> to vector<2x1xi32>
    %268 = vector.extract_strided_slice %0 {offsets = [0, 0], sizes = [2, 1], strides = [1, 1]} : vector<2x8xi32> to vector<2x1xi32>
    %269 = vector.broadcast %267 : vector<2x1xi32> to vector<2x128xi32>
    %270 = arith.cmpi eq, %6, %269 : vector<2x128xi32>
    %c64_i32_55 = arith.constant 64 : i32
    %271 = vector.broadcast %c64_i32_55 : i32 to vector<2x1xi32>
    %272 = arith.addi %268, %271 : vector<2x1xi32>
    %273 = vector.broadcast %272 : vector<2x1xi32> to vector<2x128xi32>
    %274 = arith.cmpi eq, %6, %273 : vector<2x128xi32>
    %275 = arith.ori %270, %274 : vector<2x128xi1>
    %cst_56 = arith.constant 1.000000e+00 : f32
    %cst_57 = arith.constant 0.000000e+00 : f32
    %276 = vector.broadcast %cst_56 : f32 to vector<2x128xf32>
    %277 = vector.broadcast %cst_57 : f32 to vector<2x128xf32>
    %278 = arith.select %275, %276, %277 : vector<2x128xi1>, vector<2x128xf32>
    %279 = arith.truncf %278 : vector<2x128xf32> to vector<2x128xbf16>
    %cst_58 = arith.constant dense<0.000000e+00> : vector<2x384xf32>
    %280 = tpu.matmul %279, %1, %cst_58 {dimension_numbers = #tpu.dot_dimension_numbers<[1], [0], [0], [1], [0, 0, 1, 1], [], []>} : vector<2x128xbf16>, vector<128x384xbf16>, vector<2x384xf32> -> vector<2x384xf32>
    %281 = arith.truncf %266 : vector<2x128xf32> to vector<2x128xbf16>
    %cst_59 = arith.constant dense<0.000000e+00> : vector<2x384xf32>
    %282 = tpu.matmul %281, %2, %cst_59 {dimension_numbers = #tpu.dot_dimension_numbers<[1], [0], [0], [1], [0, 0, 1, 1], [], []>} : vector<2x128xbf16>, vector<128x384xbf16>, vector<2x384xf32> -> vector<2x384xf32>
    %283 = vector.extract_strided_slice %280 {offsets = [0, 0], sizes = [2, 256], strides = [1, 1]} : vector<2x384xf32> to vector<2x256xf32>
    %284 = vector.extract_strided_slice %282 {offsets = [0, 0], sizes = [2, 256], strides = [1, 1]} : vector<2x384xf32> to vector<2x256xf32>
    %285 = arith.addf %283, %284 : vector<2x256xf32>
    %286 = arith.negf %285 : vector<2x256xf32>
    %287 = math.exp %286 : vector<2x256xf32>
    %cst_60 = arith.constant 1.000000e+00 : f32
    %288 = vector.broadcast %cst_60 : f32 to vector<2x256xf32>
    %289 = arith.addf %288, %287 : vector<2x256xf32>
    %290 = arith.divf %288, %289 : vector<2x256xf32>
    %291 = vector.extract_strided_slice %290 {offsets = [0, 0], sizes = [2, 128], strides = [1, 1]} : vector<2x256xf32> to vector<2x128xf32>
    %292 = vector.extract_strided_slice %290 {offsets = [0, 128], sizes = [2, 128], strides = [1, 1]} : vector<2x256xf32> to vector<2x128xf32>
    %293 = vector.extract_strided_slice %280 {offsets = [0, 256], sizes = [2, 128], strides = [1, 1]} : vector<2x384xf32> to vector<2x128xf32>
    %294 = vector.extract_strided_slice %282 {offsets = [0, 256], sizes = [2, 128], strides = [1, 1]} : vector<2x384xf32> to vector<2x128xf32>
    %295 = arith.addf %294, %5 : vector<2x128xf32>
    %296 = arith.mulf %291, %295 : vector<2x128xf32>
    %297 = arith.addf %293, %296 : vector<2x128xf32>
    %298 = math.tanh %297 : vector<2x128xf32>
    %cst_61 = arith.constant 1.000000e+00 : f32
    %299 = vector.broadcast %cst_61 : f32 to vector<2x128xf32>
    %300 = arith.subf %299, %292 : vector<2x128xf32>
    %301 = arith.mulf %300, %298 : vector<2x128xf32>
    %302 = arith.mulf %292, %266 : vector<2x128xf32>
    %303 = arith.addf %301, %302 : vector<2x128xf32>
    %304 = arith.truncf %303 : vector<2x128xf32> to vector<2x128xbf16>
    %c0_62 = arith.constant 0 : index
    %c0_63 = arith.constant 0 : index
    %305 = vector.load %arg4[%c0_62, %c0_63] : memref<128x128xbf16, #tpu.memory_space<vmem>>, vector<128x128xbf16>
    %cst_64 = arith.constant dense<0.000000e+00> : vector<2x128xf32>
    %306 = tpu.matmul %304, %305, %cst_64 {dimension_numbers = #tpu.dot_dimension_numbers<[1], [0], [0], [1], [0, 0, 1, 1], [], []>} : vector<2x128xbf16>, vector<128x128xbf16>, vector<2x128xf32> -> vector<2x128xf32>
    %c0_65 = arith.constant 0 : index
    %c0_66 = arith.constant 0 : index
    %307 = vector.load %arg5[%c0_65, %c0_66] : memref<1x128xf32, #tpu.memory_space<vmem>>, vector<1x128xf32>
    %308 = vector.broadcast %307 : vector<1x128xf32> to vector<2x128xf32>
    %309 = arith.addf %306, %308 : vector<2x128xf32>
    %c0_67 = arith.constant 0 : index
    %c0_68 = arith.constant 0 : index
    %310 = vector.load %arg6[%c0_67, %c0_68] : memref<2x128xf32, #tpu.memory_space<vmem>>, vector<2x128xf32>
    tpu.vector_store %arg6[%c0_67, %c0_68], %309 {strides = array<i32>} : memref<2x128xf32, #tpu.memory_space<vmem>>, vector<2x128xf32>,
    return
  }
}

</mosaic_0001>

<llo_original>
// kernel: rnn3_forward.1
$region0: #{rnn3_forward.1}
  #allocation0 [shape = 'u32[]', space=smem, size = 0x4, offset = 0x4, fixed_abs, tag = 'smem constant byte address 0x4 - core index']
  #allocation1 [shape = 'u32[144,128]{1,0:T(1,128)}', space=vmem, size = 0x12000, scoped, tag = 'internal scratch']
  %s0 = inlined_call_operand.hbm [shape: s32[2,8], index: 0, kind: input, shape index: {}]
  %s1 = inlined_call_operand.hbm [shape: bf16[128,384], index: 1, kind: input, shape index: {}]
  %s2 = inlined_call_operand.hbm [shape: bf16[128,384], index: 2, kind: input, shape index: {}]
  %s3 = inlined_call_operand.vmem [shape: f32[1,128], index: 3, kind: input, shape index: {}]
  %s4 = inlined_call_operand.hbm [shape: bf16[128,128], index: 4, kind: input, shape index: {}]
  %s5 = inlined_call_operand.hbm [shape: f32[1,128], index: 5, kind: input, shape index: {}]
  %s6 = inlined_call_operand.hbm [shape: f32[2,128], index: 6, kind: output, shape index: {}]
  %s7 = sld [smem:[#allocation0]]
  $region54: #{rnn3_forward.1} parent=0
    _
  %s9 = ssub.s32 1, %s7
  %s10 = scalar_select 0, %s9, %s7
  $region1: #{rnn3_forward.1} parent=0
    #allocation2 [shape = 'u8[1024]{0}', space=vmem, size = 0x400, scoped, tag = 'input window, operand 0, single buffered']
    #allocation3 [shape = 's32[1]{0}', space=sflag, size = 0x4, scoped, tag = 'scoped memory for rnn3_forward.1']
    #allocation4 [shape = 's32[1]{0}', space=sflag, size = 0x4, scoped, tag = 'scoped memory for rnn3_forward.1']
    #allocation5 [shape = 'u8[98304]{0}', space=vmem, size = 0x18000, scoped, tag = 'input window, operand 1, single buffered']
    #allocation6 [shape = 's32[1]{0}', space=sflag, size = 0x4, scoped, tag = 'scoped memory for rnn3_forward.1']
    #allocation7 [shape = 'u8[98304]{0}', space=vmem, size = 0x18000, scoped, tag = 'input window, operand 2, single buffered']
    #allocation8 [shape = 'u8[32768]{0}', space=vmem, size = 0x8000, scoped, tag = 'input window, operand 4, single buffered']
    #allocation9 [shape = 's32[1]{0}', space=sflag, size = 0x4, scoped, tag = 'scoped memory for rnn3_forward.1']
    #allocation10 [shape = 'u8[512]{0}', space=vmem, size = 0x400, scoped, tag = 'input window, operand 5, single buffered']
    #allocation11 [shape = 'u8[1024]{0}', space=vmem, size = 0x400, scoped, tag = 'output window, operand 0, single buffered']
    %11 = vsyncpa [#allocation3], 0
    %12 = vsyncpa [#allocation6], 0
    %13 = vsyncpa [#allocation9], 0
    %14 = vsyncpa [#allocation4], 0
    // Predicated region
    $region2: #{rnn3_forward.1} parent=1 // pred_check
      _
    $region3: #{rnn3_forward.1} parent=1 // pred_check_branch
      %16 = sbr.rel (0) target = $region5
    $region4: #{rnn3_forward.1} parent=1 // pred_region
      %s18 = ssub.s32 32, 32
      %19 = vsyncadd [#allocation3], %s18
      %s21 = sshll.u32 [#allocation2], 4
      %s22 = int_to_ptr.vmem [resolvable:$true] %s21
      %24 = dma.hbm_to_vmem [thread:$0]  %s0, 32, %s22, [#allocation3]
    $region5: #{rnn3_forward.1} parent=1 // pred_fallthru
      _
    // Predicated region
    $region6: #{rnn3_forward.1} parent=1 // pred_check
      _
    $region7: #{rnn3_forward.1} parent=1 // pred_check_branch
      %26 = sbr.rel (0) target = $region9
    $region8: #{rnn3_forward.1} parent=1 // pred_region
      %s28 = ssub.s32 3072, 3072
      %29 = vsyncadd [#allocation6], %s28
      %s30 = sshll.u32 [#allocation5], 4
      %s31 = int_to_ptr.vmem [resolvable:$true] %s30
      %36 = dma.hbm_to_vmem [thread:$0]  %s1, 3072, %s31, [#allocation6], 192, 192, 12
    $region9: #{rnn3_forward.1} parent=1 // pred_fallthru
      _
    // Predicated region
    $region10: #{rnn3_forward.1} parent=1 // pred_check
      _
    $region11: #{rnn3_forward.1} parent=1 // pred_check_branch
      %38 = sbr.rel (0) target = $region13
    $region12: #{rnn3_forward.1} parent=1 // pred_region
      %s40 = ssub.s32 3072, 3072
      %41 = vsyncadd [#allocation6], %s40
      %s42 = sshll.u32 [#allocation7], 4
      %s43 = int_to_ptr.vmem [resolvable:$true] %s42
      %48 = dma.hbm_to_vmem [thread:$0]  %s2, 3072, %s43, [#allocation6], 192, 192, 12
    $region13: #{rnn3_forward.1} parent=1 // pred_fallthru
      _
    // Predicated region
    $region14: #{rnn3_forward.1} parent=1 // pred_check
      _
    $region15: #{rnn3_forward.1} parent=1 // pred_check_branch
      %50 = sbr.rel (0) target = $region17
    $region16: #{rnn3_forward.1} parent=1 // pred_region
      _
    $region17: #{rnn3_forward.1} parent=1 // pred_fallthru
      _
    // Predicated region
    $region18: #{rnn3_forward.1} parent=1 // pred_check
      _
    $region19: #{rnn3_forward.1} parent=1 // pred_check_branch
      %52 = sbr.rel (0) target = $region21
    $region20: #{rnn3_forward.1} parent=1 // pred_region
      %s54 = ssub.s32 1024, 1024
      %55 = vsyncadd [#allocation9], %s54
      %s56 = sshll.u32 [#allocation8], 4
      %s57 = int_to_ptr.vmem [resolvable:$true] %s56
      %62 = dma.hbm_to_vmem [thread:$0]  %s4, 1024, %s57, [#allocation9], 64, 64, 4
    $region21: #{rnn3_forward.1} parent=1 // pred_fallthru
      _
    // Predicated region
    $region22: #{rnn3_forward.1} parent=1 // pred_check
      _
    $region23: #{rnn3_forward.1} parent=1 // pred_check_branch
      %64 = sbr.rel (0) target = $region25
    $region24: #{rnn3_forward.1} parent=1 // pred_region
      %s66 = ssub.s32 16, 16
      %67 = vsyncadd [#allocation9], %s66
      %s69 = sshll.u32 [#allocation10], 4
      %s70 = int_to_ptr.vmem [resolvable:$true] %s69
      %72 = dma.hbm_to_vmem [thread:$0]  %s5, 16, %s70, [#allocation9]
    $region25: #{rnn3_forward.1} parent=1 // pred_fallthru
      _
    // Predicated region
    $region26: #{rnn3_forward.1} parent=1 // pred_check
      _
    $region27: #{rnn3_forward.1} parent=1 // pred_check_branch
      %74 = sbr.rel (0) target = $region29
    $region28: #{rnn3_forward.1} parent=1 // pred_region
      %75 = dma.done [#allocation3], 32
    $region29: #{rnn3_forward.1} parent=1 // pred_fallthru
      _
    // Predicated region
    $region30: #{rnn3_forward.1} parent=1 // pred_check
      _
    $region31: #{rnn3_forward.1} parent=1 // pred_check_branch
      %77 = sbr.rel (0) target = $region33
    $region32: #{rnn3_forward.1} parent=1 // pred_region
      %78 = dma.done [#allocation6], 3072
    $region33: #{rnn3_forward.1} parent=1 // pred_fallthru
      _
    // Predicated region
    $region34: #{rnn3_forward.1} parent=1 // pred_check
      _
    $region35: #{rnn3_forward.1} parent=1 // pred_check_branch
      %80 = sbr.rel (0) target = $region37
    $region36: #{rnn3_forward.1} parent=1 // pred_region
      %81 = dma.done [#allocation6], 3072
    $region37: #{rnn3_forward.1} parent=1 // pred_fallthru
      _
    // Predicated region
    $region38: #{rnn3_forward.1} parent=1 // pred_check
      _
    $region39: #{rnn3_forward.1} parent=1 // pred_check_branch
      %83 = sbr.rel (0) target = $region41
    $region40: #{rnn3_forward.1} parent=1 // pred_region
      %84 = dma.done [#allocation9], 1024
    $region41: #{rnn3_forward.1} parent=1 // pred_fallthru
      _
    // Predicated region
    $region42: #{rnn3_forward.1} parent=1 // pred_check
      _
    $region43: #{rnn3_forward.1} parent=1 // pred_check_branch
      %86 = sbr.rel (0) target = $region45
    $region44: #{rnn3_forward.1} parent=1 // pred_region
      %87 = dma.done [#allocation9], 16
    $region45: #{rnn3_forward.1} parent=1 // pred_fallthru
      _
    %v89 = vld [vmem:[#allocation2] sm:$0x3]
    %v90 = vld [vmem:[#allocation5] sm:$0xff]
    %v91 = vld [vmem:[#allocation5 + $0x8] sm:$0xf]
    %v92 = vld [vmem:[#allocation5 + $0xc] sm:$0xff]
    %v93 = vld [vmem:[#allocation5 + $0x14] sm:$0xf]
    %v94 = vld [vmem:[#allocation5 + $0x18] sm:$0xff]
    %v95 = vld [vmem:[#allocation5 + $0x20] sm:$0xf]
    %v96 = vld [vmem:[#allocation5 + $0x24] sm:$0xff]
    %v97 = vld [vmem:[#allocation5 + $0x2c] sm:$0xf]
    %v98 = vld [vmem:[#allocation5 + $0x30] sm:$0xff]
    %v99 = vld [vmem:[#allocation5 + $0x38] sm:$0xf]
    %v100 = vld [vmem:[#allocation5 + $0x3c] sm:$0xff]
    %v101 = vld [vmem:[#allocation5 + $0x44] sm:$0xf]
    %v102 = vld [vmem:[#allocation5 + $0x48] sm:$0xff]
    %v103 = vld [vmem:[#allocation5 + $0x50] sm:$0xf]
    %v104 = vld [vmem:[#allocation5 + $0x54] sm:$0xff]
    %v105 = vld [vmem:[#allocation5 + $0x5c] sm:$0xf]
    %v106 = vld [vmem:[#allocation5 + $0x60] sm:$0xff]
    %v107 = vld [vmem:[#allocation5 + $0x68] sm:$0xf]
    %v108 = vld [vmem:[#allocation5 + $0x6c] sm:$0xff]
    %v109 = vld [vmem:[#allocation5 + $0x74] sm:$0xf]
    %v110 = vld [vmem:[#allocation5 + $0x78] sm:$0xff]
    %v111 = vld [vmem:[#allocation5 + $0x80] sm:$0xf]
    %v112 = vld [vmem:[#allocation5 + $0x84] sm:$0xff]
    %v113 = vld [vmem:[#allocation5 + $0x8c] sm:$0xf]
    %v114 = vld [vmem:[#allocation5 + $0x90] sm:$0xff]
    %v115 = vld [vmem:[#allocation5 + $0x98] sm:$0xf]
    %v116 = vld [vmem:[#allocation5 + $0x9c] sm:$0xff]
    %v117 = vld [vmem:[#allocation5 + $0xa4] sm:$0xf]
    %v118 = vld [vmem:[#allocation5 + $0xa8] sm:$0xff]
    %v119 = vld [vmem:[#allocation5 + $0xb0] sm:$0xf]
    %v120 = vld [vmem:[#allocation5 + $0xb4] sm:$0xff]
    %v121 = vld [vmem:[#allocation5 + $0xbc] sm:$0xf]
    %v122 = vld [vmem:[#allocation7] sm:$0xff]
    %v123 = vld [vmem:[#allocation7 + $0x8] sm:$0xf]
    %v124 = vld [vmem:[#allocation7 + $0xc] sm:$0xff]
    %v125 = vld [vmem:[#allocation7 + $0x14] sm:$0xf]
    %v126 = vld [vmem:[#allocation7 + $0x18] sm:$0xff]
    %v127 = vld [vmem:[#allocation7 + $0x20] sm:$0xf]
    %v128 = vld [vmem:[#allocation7 + $0x24] sm:$0xff]
    %v129 = vld [vmem:[#allocation7 + $0x2c] sm:$0xf]
    %v130 = vld [vmem:[#allocation7 + $0x30] sm:$0xff]
    %v131 = vld [vmem:[#allocation7 + $0x38] sm:$0xf]
    %v132 = vld [vmem:[#allocation7 + $0x3c] sm:$0xff]
    %v133 = vld [vmem:[#allocation7 + $0x44] sm:$0xf]
    %v134 = vld [vmem:[#allocation7 + $0x48] sm:$0xff]
    %v135 = vld [vmem:[#allocation7 + $0x50] sm:$0xf]
    %v136 = vld [vmem:[#allocation7 + $0x54] sm:$0xff]
    %v137 = vld [vmem:[#allocation7 + $0x5c] sm:$0xf]
    %v138 = vld [vmem:[#allocation7 + $0x60] sm:$0xff]
    %v139 = vld [vmem:[#allocation7 + $0x68] sm:$0xf]
    %v140 = vld [vmem:[#allocation7 + $0x6c] sm:$0xff]
    %v141 = vld [vmem:[#allocation7 + $0x74] sm:$0xf]
    %v142 = vld [vmem:[#allocation7 + $0x78] sm:$0xff]
    %v143 = vld [vmem:[#allocation7 + $0x80] sm:$0xf]
    %v144 = vld [vmem:[#allocation7 + $0x84] sm:$0xff]
    %v145 = vld [vmem:[#allocation7 + $0x8c] sm:$0xf]
    %v146 = vld [vmem:[#allocation7 + $0x90] sm:$0xff]
    %v147 = vld [vmem:[#allocation7 + $0x98] sm:$0xf]
    %v148 = vld [vmem:[#allocation7 + $0x9c] sm:$0xff]
    %v149 = vld [vmem:[#allocation7 + $0xa4] sm:$0xf]
    %v150 = vld [vmem:[#allocation7 + $0xa8] sm:$0xff]
    %v151 = vld [vmem:[#allocation7 + $0xb0] sm:$0xf]
    %v152 = vld [vmem:[#allocation7 + $0xb4] sm:$0xff]
    %v153 = vld [vmem:[#allocation7 + $0xbc] sm:$0xf]
    %v154 = vld [vmem:[%s3] sm:$0x1]
    %v156 = vlaneseq
    %v157 = vshrl.u32 %v156, 7
    %v158 = vsub.s32 0, %v157
    %v159 = vrot.slane %v154, %v158
    %v161 = vlaneseq
    %v162 = vand.u32 %v161, 127
    %163 = vset.pattern.permute.xlu0 0
    %164 = vperm.xlu0 %163, %v89
    %v165 = vpop.permute.xlu0 %164
    %vm166 = vcmp.eq.s32.totalorder %v162, %v165
    %v167 = vadd.s32 %v89, 64
    %168 = vset.pattern.permute.xlu0 7
    %169 = vperm.xlu0 %168, %v167
    %v170 = vpop.permute.xlu0 %169
    %vm171 = vcmp.eq.s32.totalorder %v162, %v170
    %vm172 = vmor %vm166, %vm171
    %v173 = vsel %vm172, 1.0, 0.0
    %v174 = vpack.c.bf16 %v173, %v173
    %v207 = vunpack.c.l.b16 %v90
    %v208 = vunpack.c.h.b16 %v90
    %v209 = vunpack.c.l.b16 %v91
    %v210 = vunpack.c.l.b16 %v92
    %v211 = vunpack.c.h.b16 %v92
    %v212 = vunpack.c.l.b16 %v93
    %v213 = vunpack.c.l.b16 %v94
    %v214 = vunpack.c.h.b16 %v94
    %v215 = vunpack.c.l.b16 %v95
    %v216 = vunpack.c.l.b16 %v96
    %v217 = vunpack.c.h.b16 %v96
    %v218 = vunpack.c.l.b16 %v97
    %v219 = vunpack.c.l.b16 %v98
    %v220 = vunpack.c.h.b16 %v98
    %v221 = vunpack.c.l.b16 %v99
    %v222 = vunpack.c.l.b16 %v100
    %v223 = vunpack.c.h.b16 %v100
    %v224 = vunpack.c.l.b16 %v101
    %v225 = vunpack.c.l.b16 %v102
    %v226 = vunpack.c.h.b16 %v102
    %v227 = vunpack.c.l.b16 %v103
    %v228 = vunpack.c.l.b16 %v104
    %v229 = vunpack.c.h.b16 %v104
    %v230 = vunpack.c.l.b16 %v105
    %v231 = vunpack.c.l.b16 %v106
    %v232 = vunpack.c.h.b16 %v106
    %v233 = vunpack.c.l.b16 %v107
    %v234 = vunpack.c.l.b16 %v108
    %v235 = vunpack.c.h.b16 %v108
    %v236 = vunpack.c.l.b16 %v109
    %v237 = vunpack.c.l.b16 %v110
    %v238 = vunpack.c.h.b16 %v110
    %v239 = vunpack.c.l.b16 %v111
    %v240 = vunpack.c.l.b16 %v112
    %v241 = vunpack.c.h.b16 %v112
    %v242 = vunpack.c.l.b16 %v113
    %v243 = vunpack.c.l.b16 %v114
    %v244 = vunpack.c.h.b16 %v114
    %v245 = vunpack.c.l.b16 %v115
    %v246 = vunpack.c.l.b16 %v116
    %v247 = vunpack.c.h.b16 %v116
    %v248 = vunpack.c.l.b16 %v117
    %v249 = vunpack.c.l.b16 %v118
    %v250 = vunpack.c.h.b16 %v118
    %v251 = vunpack.c.l.b16 %v119
    %v252 = vunpack.c.l.b16 %v120
    %v253 = vunpack.c.h.b16 %v120
    %v254 = vunpack.c.l.b16 %v121
    %v255 = vpack.c.b16 %v210, %v207
    %v256 = vpack.c.b16 %v211, %v208
    %v257 = vpack.c.b16 %v212, %v209
    %v258 = vpack.c.b16 %v216, %v213
    %v259 = vpack.c.b16 %v217, %v214
    %v260 = vpack.c.b16 %v218, %v215
    %v261 = vpack.c.b16 %v222, %v219
    %v262 = vpack.c.b16 %v223, %v220
    %v263 = vpack.c.b16 %v224, %v221
    %v264 = vpack.c.b16 %v228, %v225
    %v265 = vpack.c.b16 %v229, %v226
    %v266 = vpack.c.b16 %v230, %v227
    %v267 = vpack.c.b16 %v234, %v231
    %v268 = vpack.c.b16 %v235, %v232
    %v269 = vpack.c.b16 %v236, %v233
    %v270 = vpack.c.b16 %v240, %v237
    %v271 = vpack.c.b16 %v241, %v238
    %v272 = vpack.c.b16 %v242, %v239
    %v273 = vpack.c.b16 %v246, %v243
    %v274 = vpack.c.b16 %v247, %v244
    %v275 = vpack.c.b16 %v248, %v245
    %v276 = vpack.c.b16 %v252, %v249
    %v277 = vpack.c.b16 %v253, %v250
    %v278 = vpack.c.b16 %v254, %v251
    %303 = vmatprep.subr.bf16.mxu0 %v277
    %304 = vmatpush1.bf16.msra.mxu0 %v276
    %305 = vmatprep.subr.bf16.mxu0 %v274
    %306 = vmatpush1.bf16.msra.mxu0 %v273
    %307 = vmatprep.subr.bf16.mxu0 %v271
    %308 = vmatpush1.bf16.msra.mxu0 %v270
    %309 = vmatprep.subr.bf16.mxu0 %v268
    %310 = vmatpush1.bf16.msra.mxu0 %v267
    %311 = vmatprep.subr.bf16.mxu0 %v265
    %312 = vmatpush1.bf16.msra.mxu0 %v264
    %313 = vmatprep.subr.bf16.mxu0 %v262
    %314 = vmatpush1.bf16.msra.mxu0 %v261
    %315 = vmatprep.subr.bf16.mxu0 %v259
    %316 = vmatpush1.bf16.msra.mxu0 %v258
    %317 = vmatprep.subr.bf16.mxu0 %v256
    %318 = vmatpush1.bf16.msra.mxu0 %v255
    %319 = vmatprep.subr.bf16.mxu0 0
    %320 = vmatpush2.bf16.msra.mxu0 0
    %321 = vmatprep.subr.bf16.mxu0 0
    %322 = vmatpush2.bf16.msra.mxu0 0
    %323 = vmatprep.subr.bf16.mxu0 0
    %324 = vmatpush2.bf16.msra.mxu0 0
    %325 = vmatprep.subr.bf16.mxu0 0
    %326 = vmatpush2.bf16.msra.mxu0 0
    %327 = vmatprep.subr.bf16.mxu0 0
    %328 = vmatpush2.bf16.msra.mxu0 0
    %329 = vmatprep.subr.bf16.mxu0 0
    %330 = vmatpush2.bf16.msra.mxu0 0
    %331 = vmatprep.subr.bf16.mxu0 0
    %332 = vmatpush2.bf16.msra.mxu0 0
    %333 = vmatprep.subr.bf16.mxu0 0
    %334 = vmatpush2.bf16.msra.mxu0 0
    %335 = vmatprep.mubr.bf16.mxu0 0
    %336 = vmatmul.mubr.bf16.gmra.mxu0 %v174
    %v337 = vpop.f32.mrf.mxu0
    %v338 = vadd.f32 0.0, %v337
    %v339 = vpop.f32.mrf.mxu0
    %v340 = vadd.f32 0.0, %v339
    %v341 = vpop.f32.mrf.mxu0
    %v342 = vpop.f32.mrf.mxu0
    %343 = vdwg.mxu0
    %344 = vmatprep.subr.bf16.mxu0 0
    %345 = vmatpush1.bf16.msra.mxu0 %v278
    %346 = vmatprep.subr.bf16.mxu0 0
    %347 = vmatpush1.bf16.msra.mxu0 %v275
    %348 = vmatprep.subr.bf16.mxu0 0
    %349 = vmatpush1.bf16.msra.mxu0 %v272
    %350 = vmatprep.subr.bf16.mxu0 0
    %351 = vmatpush1.bf16.msra.mxu0 %v269
    %352 = vmatprep.subr.bf16.mxu0 0
    %353 = vmatpush1.bf16.msra.mxu0 %v266
    %354 = vmatprep.subr.bf16.mxu0 0
    %355 = vmatpush1.bf16.msra.mxu0 %v263
    %356 = vmatprep.subr.bf16.mxu0 0
    %357 = vmatpush1.bf16.msra.mxu0 %v260
    %358 = vmatprep.subr.bf16.mxu0 0
    %359 = vmatpush1.bf16.msra.mxu0 %v257
    %360 = vmatprep.subr.bf16.mxu0 0
    %361 = vmatpush2.bf16.msra.mxu0 0
    %362 = vmatprep.subr.bf16.mxu0 0
    %363 = vmatpush2.bf16.msra.mxu0 0
    %364 = vmatprep.subr.bf16.mxu0 0
    %365 = vmatpush2.bf16.msra.mxu0 0
    %366 = vmatprep.subr.bf16.mxu0 0
    %367 = vmatpush2.bf16.msra.mxu0 0
    %368 = vmatprep.subr.bf16.mxu0 0
    %369 = vmatpush2.bf16.msra.mxu0 0
    %370 = vmatprep.subr.bf16.mxu0 0
    %371 = vmatpush2.bf16.msra.mxu0 0
    %372 = vmatprep.subr.bf16.mxu0 0
    %373 = vmatpush2.bf16.msra.mxu0 0
    %374 = vmatprep.subr.bf16.mxu0 0
    %375 = vmatpush2.bf16.msra.mxu0 0
    %376 = vmatprep.mubr.bf16.mxu0 0
    %377 = vmatmul.mubr.bf16.gmra.mxu0 %v174
    %v378 = vpop.f32.mrf.mxu0
    %v379 = vadd.f32 0.0, %v378
    %v380 = vpop.f32.mrf.mxu0
    %v381 = vpop.f32.mrf.mxu0
    %v382 = vpop.f32.mrf.mxu0
    %383 = vdwg.mxu0
    %v416 = vunpack.c.l.b16 %v122
    %v417 = vunpack.c.h.b16 %v122
    %v418 = vunpack.c.l.b16 %v123
    %v419 = vunpack.c.l.b16 %v124
    %v420 = vunpack.c.h.b16 %v124
    %v421 = vunpack.c.l.b16 %v125
    %v422 = vunpack.c.l.b16 %v126
    %v423 = vunpack.c.h.b16 %v126
    %v424 = vunpack.c.l.b16 %v127
    %v425 = vunpack.c.l.b16 %v128
    %v426 = vunpack.c.h.b16 %v128
    %v427 = vunpack.c.l.b16 %v129
    %v428 = vunpack.c.l.b16 %v130
    %v429 = vunpack.c.h.b16 %v130
    %v430 = vunpack.c.l.b16 %v131
    %v431 = vunpack.c.l.b16 %v132
    %v432 = vunpack.c.h.b16 %v132
    %v433 = vunpack.c.l.b16 %v133
    %v434 = vunpack.c.l.b16 %v134
    %v435 = vunpack.c.h.b16 %v134
    %v436 = vunpack.c.l.b16 %v135
    %v437 = vunpack.c.l.b16 %v136
    %v438 = vunpack.c.h.b16 %v136
    %v439 = vunpack.c.l.b16 %v137
    %v440 = vunpack.c.l.b16 %v138
    %v441 = vunpack.c.h.b16 %v138
    %v442 = vunpack.c.l.b16 %v139
    %v443 = vunpack.c.l.b16 %v140
    %v444 = vunpack.c.h.b16 %v140
    %v445 = vunpack.c.l.b16 %v141
    %v446 = vunpack.c.l.b16 %v142
    %v447 = vunpack.c.h.b16 %v142
    %v448 = vunpack.c.l.b16 %v143
    %v449 = vunpack.c.l.b16 %v144
    %v450 = vunpack.c.h.b16 %v144
    %v451 = vunpack.c.l.b16 %v145
    %v452 = vunpack.c.l.b16 %v146
    %v453 = vunpack.c.h.b16 %v146
    %v454 = vunpack.c.l.b16 %v147
    %v455 = vunpack.c.l.b16 %v148
    %v456 = vunpack.c.h.b16 %v148
    %v457 = vunpack.c.l.b16 %v149
    %v458 = vunpack.c.l.b16 %v150
    %v459 = vunpack.c.h.b16 %v150
    %v460 = vunpack.c.l.b16 %v151
    %v461 = vunpack.c.l.b16 %v152
    %v462 = vunpack.c.h.b16 %v152
    %v463 = vunpack.c.l.b16 %v153
    %v464 = vpack.c.b16 %v419, %v416
    %v465 = vpack.c.b16 %v420, %v417
    %v466 = vpack.c.b16 %v421, %v418
    %v467 = vpack.c.b16 %v425, %v422
    %v468 = vpack.c.b16 %v426, %v423
    %v469 = vpack.c.b16 %v427, %v424
    %v470 = vpack.c.b16 %v431, %v428
    %v471 = vpack.c.b16 %v432, %v429
    %v472 = vpack.c.b16 %v433, %v430
    %v473 = vpack.c.b16 %v437, %v434
    %v474 = vpack.c.b16 %v438, %v435
    %v475 = vpack.c.b16 %v439, %v436
    %v476 = vpack.c.b16 %v443, %v440
    %v477 = vpack.c.b16 %v444, %v441
    %v478 = vpack.c.b16 %v445, %v442
    %v479 = vpack.c.b16 %v449, %v446
    %v480 = vpack.c.b16 %v450, %v447
    %v481 = vpack.c.b16 %v451, %v448
    %v482 = vpack.c.b16 %v455, %v452
    %v483 = vpack.c.b16 %v456, %v453
    %v484 = vpack.c.b16 %v457, %v454
    %v485 = vpack.c.b16 %v461, %v458
    %v486 = vpack.c.b16 %v462, %v459
    %v487 = vpack.c.b16 %v463, %v460
    %512 = vmatprep.subr.bf16.mxu0 %v486
    %513 = vmatpush1.bf16.msra.mxu0 %v485
    %514 = vmatprep.subr.bf16.mxu0 %v483
    %515 = vmatpush1.bf16.msra.mxu0 %v482
    %516 = vmatprep.subr.bf16.mxu0 %v480
    %517 = vmatpush1.bf16.msra.mxu0 %v479
    %518 = vmatprep.subr.bf16.mxu0 %v477
    %519 = vmatpush1.bf16.msra.mxu0 %v476
    %520 = vmatprep.subr.bf16.mxu0 %v474
    %521 = vmatpush1.bf16.msra.mxu0 %v473
    %522 = vmatprep.subr.bf16.mxu0 %v471
    %523 = vmatpush1.bf16.msra.mxu0 %v470
    %524 = vmatprep.subr.bf16.mxu0 %v468
    %525 = vmatpush1.bf16.msra.mxu0 %v467
    %526 = vmatprep.subr.bf16.mxu0 %v465
    %527 = vmatpush1.bf16.msra.mxu0 %v464
    %528 = vmatprep.subr.bf16.mxu0 0
    %529 = vmatpush2.bf16.msra.mxu0 0
    %530 = vmatprep.subr.bf16.mxu0 0
    %531 = vmatpush2.bf16.msra.mxu0 0
    %532 = vmatprep.subr.bf16.mxu0 0
    %533 = vmatpush2.bf16.msra.mxu0 0
    %534 = vmatprep.subr.bf16.mxu0 0
    %535 = vmatpush2.bf16.msra.mxu0 0
    %536 = vmatprep.subr.bf16.mxu0 0
    %537 = vmatpush2.bf16.msra.mxu0 0
    %538 = vmatprep.subr.bf16.mxu0 0
    %539 = vmatpush2.bf16.msra.mxu0 0
    %540 = vmatprep.subr.bf16.mxu0 0
    %541 = vmatpush2.bf16.msra.mxu0 0
    %542 = vmatprep.subr.bf16.mxu0 0
    %543 = vmatpush2.bf16.msra.mxu0 0
    %544 = vmatprep.mubr.bf16.mxu0 0
    %545 = vmatmul.mubr.bf16.gmra.mxu0 0
    %v546 = vpop.f32.mrf.mxu0
    %v547 = vadd.f32 0.0, %v546
    %v548 = vpop.f32.mrf.mxu0
    %v549 = vadd.f32 0.0, %v548
    %v550 = vpop.f32.mrf.mxu0
    %v551 = vpop.f32.mrf.mxu0
    %552 = vdwg.mxu0
    %553 = vmatprep.subr.bf16.mxu0 0
    %554 = vmatpush1.bf16.msra.mxu0 %v487
    %555 = vmatprep.subr.bf16.mxu0 0
    %556 = vmatpush1.bf16.msra.mxu0 %v484
    %557 = vmatprep.subr.bf16.mxu0 0
    %558 = vmatpush1.bf16.msra.mxu0 %v481
    %559 = vmatprep.subr.bf16.mxu0 0
    %560 = vmatpush1.bf16.msra.mxu0 %v478
    %561 = vmatprep.subr.bf16.mxu0 0
    %562 = vmatpush1.bf16.msra.mxu0 %v475
    %563 = vmatprep.subr.bf16.mxu0 0
    %564 = vmatpush1.bf16.msra.mxu0 %v472
    %565 = vmatprep.subr.bf16.mxu0 0
    %566 = vmatpush1.bf16.msra.mxu0 %v469
    %567 = vmatprep.subr.bf16.mxu0 0
    %568 = vmatpush1.bf16.msra.mxu0 %v466
    %569 = vmatprep.subr.bf16.mxu0 0
    %570 = vmatpush2.bf16.msra.mxu0 0
    %571 = vmatprep.subr.bf16.mxu0 0
    %572 = vmatpush2.bf16.msra.mxu0 0
    %573 = vmatprep.subr.bf16.mxu0 0
    %574 = vmatpush2.bf16.msra.mxu0 0
    %575 = vmatprep.subr.bf16.mxu0 0
    %576 = vmatpush2.bf16.msra.mxu0 0
    %577 = vmatprep.subr.bf16.mxu0 0
    %578 = vmatpush2.bf16.msra.mxu0 0
    %579 = vmatprep.subr.bf16.mxu0 0
    %580 = vmatpush2.bf16.msra.mxu0 0
    %581 = vmatprep.subr.bf16.mxu0 0
    %582 = vmatpush2.bf16.msra.mxu0 0
    %583 = vmatprep.subr.bf16.mxu0 0
    %584 = vmatpush2.bf16.msra.mxu0 0
    %585 = vmatprep.mubr.bf16.mxu0 0
    %586 = vmatmul.mubr.bf16.gmra.mxu0 0
    %v587 = vpop.f32.mrf.mxu0
    %v588 = vadd.f32 0.0, %v587
    %v589 = vpop.f32.mrf.mxu0
    %v590 = vpop.f32.mrf.mxu0
    %v591 = vpop.f32.mrf.mxu0
    %592 = vdwg.mxu0
    %v593 = vadd.f32 %v338, %v547
    %v594 = vadd.f32 %v340, %v549
    %v595 = vxor.u32 %v593, 2147483648
    %v596 = vxor.u32 %v594, 2147483648
    %v597 = vmul.f32 %v595, 1.442695
    %v598 = vpow.pop %v597
    %v599 = vmul.f32 %v596, 1.442695
    %v600 = vpow.pop %v599
    %v601 = vadd.f32 %v598, 1.0
    %v602 = vadd.f32 %v600, 1.0
    %v603 = vrcp.pop %v601
    %v604 = vmul.f32 1.0, %v603
    %v605 = vrcp.pop %v602
    %v606 = vmul.f32 1.0, %v605
    %v607 = vadd.f32 %v588, %v159
    %v608 = vmul.f32 %v604, %v607
    %v609 = vadd.f32 %v379, %v608
    %v610 = vtanh.pop %v609
    %v611 = vsub.f32 1.0, %v606
    %v612 = vmul.f32 %v611, %v610
    %v613 = vmul.f32 %v606, 0.0
    %v614 = vadd.f32 %v612, %v613
    %615 = vset.pattern.permute.xlu0 1
    %616 = vperm.xlu0 %615, %v89
    %v617 = vpop.permute.xlu0 %616
    %vm618 = vcmp.eq.s32.totalorder %v162, %v617
    %619 = vset.pattern.permute.xlu0 6
    %620 = vperm.xlu0 %619, %v167
    %v621 = vpop.permute.xlu0 %620
    %vm622 = vcmp.eq.s32.totalorder %v162, %v621
    %vm623 = vmor %vm618, %vm622
    %v624 = vsel %vm623, 1.0, 0.0
    %v625 = vpack.c.bf16 %v624, %v624
    %626 = vmatprep.subr.bf16.mxu0 %v277
    %627 = vmatpush1.bf16.msra.mxu0 %v276
    %628 = vmatprep.subr.bf16.mxu0 %v274
    %629 = vmatpush1.bf16.msra.mxu0 %v273
    %630 = vmatprep.subr.bf16.mxu0 %v271
    %631 = vmatpush1.bf16.msra.mxu0 %v270
    %632 = vmatprep.subr.bf16.mxu0 %v268
    %633 = vmatpush1.bf16.msra.mxu0 %v267
    %634 = vmatprep.subr.bf16.mxu0 %v265
    %635 = vmatpush1.bf16.msra.mxu0 %v264
    %636 = vmatprep.subr.bf16.mxu0 %v262
    %637 = vmatpush1.bf16.msra.mxu0 %v261
    %638 = vmatprep.subr.bf16.mxu0 %v259
    %639 = vmatpush1.bf16.msra.mxu0 %v258
    %640 = vmatprep.subr.bf16.mxu0 %v256
    %641 = vmatpush1.bf16.msra.mxu0 %v255
    %642 = vmatprep.subr.bf16.mxu0 0
    %643 = vmatpush2.bf16.msra.mxu0 0
    %644 = vmatprep.subr.bf16.mxu0 0
    %645 = vmatpush2.bf16.msra.mxu0 0
    %646 = vmatprep.subr.bf16.mxu0 0
    %647 = vmatpush2.bf16.msra.mxu0 0
    %648 = vmatprep.subr.bf16.mxu0 0
    %649 = vmatpush2.bf16.msra.mxu0 0
    %650 = vmatprep.subr.bf16.mxu0 0
    %651 = vmatpush2.bf16.msra.mxu0 0
    %652 = vmatprep.subr.bf16.mxu0 0
    %653 = vmatpush2.bf16.msra.mxu0 0
    %654 = vmatprep.subr.bf16.mxu0 0
    %655 = vmatpush2.bf16.msra.mxu0 0
    %656 = vmatprep.subr.bf16.mxu0 0
    %657 = vmatpush2.bf16.msra.mxu0 0
    %658 = vmatprep.mubr.bf16.mxu0 0
    %659 = vmatmul.mubr.bf16.gmra.mxu0 %v625
    %v660 = vpop.f32.mrf.mxu0
    %v661 = vadd.f32 0.0, %v660
    %v662 = vpop.f32.mrf.mxu0
    %v663 = vadd.f32 0.0, %v662
    %v664 = vpop.f32.mrf.mxu0
    %v665 = vpop.f32.mrf.mxu0
    %666 = vdwg.mxu0
    %667 = vmatprep.subr.bf16.mxu0 0
    %668 = vmatpush1.bf16.msra.mxu0 %v278
    %669 = vmatprep.subr.bf16.mxu0 0
    %670 = vmatpush1.bf16.msra.mxu0 %v275
    %671 = vmatprep.subr.bf16.mxu0 0
    %672 = vmatpush1.bf16.msra.mxu0 %v272
    %673 = vmatprep.subr.bf16.mxu0 0
    %674 = vmatpush1.bf16.msra.mxu0 %v269
    %675 = vmatprep.subr.bf16.mxu0 0
    %676 = vmatpush1.bf16.msra.mxu0 %v266
    %677 = vmatprep.subr.bf16.mxu0 0
    %678 = vmatpush1.bf16.msra.mxu0 %v263
    %679 = vmatprep.subr.bf16.mxu0 0
    %680 = vmatpush1.bf16.msra.mxu0 %v260
    %681 = vmatprep.subr.bf16.mxu0 0
    %682 = vmatpush1.bf16.msra.mxu0 %v257
    %683 = vmatprep.subr.bf16.mxu0 0
    %684 = vmatpush2.bf16.msra.mxu0 0
    %685 = vmatprep.subr.bf16.mxu0 0
    %686 = vmatpush2.bf16.msra.mxu0 0
    %687 = vmatprep.subr.bf16.mxu0 0
    %688 = vmatpush2.bf16.msra.mxu0 0
    %689 = vmatprep.subr.bf16.mxu0 0
    %690 = vmatpush2.bf16.msra.mxu0 0
    %691 = vmatprep.subr.bf16.mxu0 0
    %692 = vmatpush2.bf16.msra.mxu0 0
    %693 = vmatprep.subr.bf16.mxu0 0
    %694 = vmatpush2.bf16.msra.mxu0 0
    %695 = vmatprep.subr.bf16.mxu0 0
    %696 = vmatpush2.bf16.msra.mxu0 0
    %697 = vmatprep.subr.bf16.mxu0 0
    %698 = vmatpush2.bf16.msra.mxu0 0
    %699 = vmatprep.mubr.bf16.mxu0 0
    %700 = vmatmul.mubr.bf16.gmra.mxu0 %v625
    %v701 = vpop.f32.mrf.mxu0
    %v702 = vadd.f32 0.0, %v701
    %v703 = vpop.f32.mrf.mxu0
    %v704 = vpop.f32.mrf.mxu0
    %v705 = vpop.f32.mrf.mxu0
    %706 = vdwg.mxu0
    %v707 = vpack.c.bf16 %v614, %v614
    %708 = vmatprep.subr.bf16.mxu0 %v486
    %709 = vmatpush1.bf16.msra.mxu0 %v485
    %710 = vmatprep.subr.bf16.mxu0 %v483
    %711 = vmatpush1.bf16.msra.mxu0 %v482
    %712 = vmatprep.subr.bf16.mxu0 %v480
    %713 = vmatpush1.bf16.msra.mxu0 %v479
    %714 = vmatprep.subr.bf16.mxu0 %v477
    %715 = vmatpush1.bf16.msra.mxu0 %v476
    %716 = vmatprep.subr.bf16.mxu0 %v474
    %717 = vmatpush1.bf16.msra.mxu0 %v473
    %718 = vmatprep.subr.bf16.mxu0 %v471
    %719 = vmatpush1.bf16.msra.mxu0 %v470
    %720 = vmatprep.subr.bf16.mxu0 %v468
    %721 = vmatpush1.bf16.msra.mxu0 %v467
    %722 = vmatprep.subr.bf16.mxu0 %v465
    %723 = vmatpush1.bf16.msra.mxu0 %v464
    %724 = vmatprep.subr.bf16.mxu0 0
    %725 = vmatpush2.bf16.msra.mxu0 0
    %726 = vmatprep.subr.bf16.mxu0 0
    %727 = vmatpush2.bf16.msra.mxu0 0
    %728 = vmatprep.subr.bf16.mxu0 0
    %729 = vmatpush2.bf16.msra.mxu0 0
    %730 = vmatprep.subr.bf16.mxu0 0
    %731 = vmatpush2.bf16.msra.mxu0 0
    %732 = vmatprep.subr.bf16.mxu0 0
    %733 = vmatpush2.bf16.msra.mxu0 0
    %734 = vmatprep.subr.bf16.mxu0 0
    %735 = vmatpush2.bf16.msra.mxu0 0
    %736 = vmatprep.subr.bf16.mxu0 0
    %737 = vmatpush2.bf16.msra.mxu0 0
    %738 = vmatprep.subr.bf16.mxu0 0
    %739 = vmatpush2.bf16.msra.mxu0 0
    %740 = vmatprep.mubr.bf16.mxu0 0
    %741 = vmatmul.mubr.bf16.gmra.mxu0 %v707
    %v742 = vpop.f32.mrf.mxu0
    %v743 = vadd.f32 0.0, %v742
    %v744 = vpop.f32.mrf.mxu0
    %v745 = vadd.f32 0.0, %v744
    %v746 = vpop.f32.mrf.mxu0
    %v747 = vpop.f32.mrf.mxu0
    %748 = vdwg.mxu0
    %749 = vmatprep.subr.bf16.mxu0 0
    %750 = vmatpush1.bf16.msra.mxu0 %v487
    %751 = vmatprep.subr.bf16.mxu0 0
    %752 = vmatpush1.bf16.msra.mxu0 %v484
    %753 = vmatprep.subr.bf16.mxu0 0
    %754 = vmatpush1.bf16.msra.mxu0 %v481
    %755 = vmatprep.subr.bf16.mxu0 0
    %756 = vmatpush1.bf16.msra.mxu0 %v478
    %757 = vmatprep.subr.bf16.mxu0 0
    %758 = vmatpush1.bf16.msra.mxu0 %v475
    %759 = vmatprep.subr.bf16.mxu0 0
    %760 = vmatpush1.bf16.msra.mxu0 %v472
    %761 = vmatprep.subr.bf16.mxu0 0
    %762 = vmatpush1.bf16.msra.mxu0 %v469
    %763 = vmatprep.subr.bf16.mxu0 0
    %764 = vmatpush1.bf16.msra.mxu0 %v466
    %765 = vmatprep.subr.bf16.mxu0 0
    %766 = vmatpush2.bf16.msra.mxu0 0
    %767 = vmatprep.subr.bf16.mxu0 0
    %768 = vmatpush2.bf16.msra.mxu0 0
    %769 = vmatprep.subr.bf16.mxu0 0
    %770 = vmatpush2.bf16.msra.mxu0 0
    %771 = vmatprep.subr.bf16.mxu0 0
    %772 = vmatpush2.bf16.msra.mxu0 0
    %773 = vmatprep.subr.bf16.mxu0 0
    %774 = vmatpush2.bf16.msra.mxu0 0
    %775 = vmatprep.subr.bf16.mxu0 0
    %776 = vmatpush2.bf16.msra.mxu0 0
    %777 = vmatprep.subr.bf16.mxu0 0
    %778 = vmatpush2.bf16.msra.mxu0 0
    %779 = vmatprep.subr.bf16.mxu0 0
    %780 = vmatpush2.bf16.msra.mxu0 0
    %781 = vmatprep.mubr.bf16.mxu0 0
    %782 = vmatmul.mubr.bf16.gmra.mxu0 %v707
    %v783 = vpop.f32.mrf.mxu0
    %v784 = vadd.f32 0.0, %v783
    %v785 = vpop.f32.mrf.mxu0
    %v786 = vpop.f32.mrf.mxu0
    %v787 = vpop.f32.mrf.mxu0
    %788 = vdwg.mxu0
    %v789 = vadd.f32 %v661, %v743
    %v790 = vadd.f32 %v663, %v745
    %v791 = vxor.u32 %v789, 2147483648
    %v792 = vxor.u32 %v790, 2147483648
    %v793 = vmul.f32 %v791, 1.442695
    %v794 = vpow.pop %v793
    %v795 = vmul.f32 %v792, 1.442695
    %v796 = vpow.pop %v795
    %v797 = vadd.f32 %v794, 1.0
    %v798 = vadd.f32 %v796, 1.0
    %v799 = vrcp.pop %v797
    %v800 = vmul.f32 1.0, %v799
    %v801 = vrcp.pop %v798
    %v802 = vmul.f32 1.0, %v801
    %v803 = vadd.f32 %v784, %v159
    %v804 = vmul.f32 %v800, %v803
    %v805 = vadd.f32 %v702, %v804
    %v806 = vtanh.pop %v805
    %v807 = vsub.f32 1.0, %v802
    %v808 = vmul.f32 %v807, %v806
    %v809 = vmul.f32 %v802, %v614
    %v810 = vadd.f32 %v808, %v809
    %811 = vset.pattern.permute.xlu0 2
    %812 = vperm.xlu0 %811, %v89
    %v813 = vpop.permute.xlu0 %812
    %vm814 = vcmp.eq.s32.totalorder %v162, %v813
    %815 = vset.pattern.permute.xlu0 5
    %816 = vperm.xlu0 %815, %v167
    %v817 = vpop.permute.xlu0 %816
    %vm818 = vcmp.eq.s32.totalorder %v162, %v817
    %vm819 = vmor %vm814, %vm818
    %v820 = vsel %vm819, 1.0, 0.0
    %v821 = vpack.c.bf16 %v820, %v820
    %822 = vmatprep.subr.bf16.mxu0 %v277
    %823 = vmatpush1.bf16.msra.mxu0 %v276
    %824 = vmatprep.subr.bf16.mxu0 %v274
    %825 = vmatpush1.bf16.msra.mxu0 %v273
    %826 = vmatprep.subr.bf16.mxu0 %v271
    %827 = vmatpush1.bf16.msra.mxu0 %v270
    %828 = vmatprep.subr.bf16.mxu0 %v268
    %829 = vmatpush1.bf16.msra.mxu0 %v267
    %830 = vmatprep.subr.bf16.mxu0 %v265
    %831 = vmatpush1.bf16.msra.mxu0 %v264
    %832 = vmatprep.subr.bf16.mxu0 %v262
    %833 = vmatpush1.bf16.msra.mxu0 %v261
    %834 = vmatprep.subr.bf16.mxu0 %v259
    %835 = vmatpush1.bf16.msra.mxu0 %v258
    %836 = vmatprep.subr.bf16.mxu0 %v256
    %837 = vmatpush1.bf16.msra.mxu0 %v255
    %838 = vmatprep.subr.bf16.mxu0 0
    %839 = vmatpush2.bf16.msra.mxu0 0
    %840 = vmatprep.subr.bf16.mxu0 0
    %841 = vmatpush2.bf16.msra.mxu0 0
    %842 = vmatprep.subr.bf16.mxu0 0
    %843 = vmatpush2.bf16.msra.mxu0 0
    %844 = vmatprep.subr.bf16.mxu0 0
    %845 = vmatpush2.bf16.msra.mxu0 0
    %846 = vmatprep.subr.bf16.mxu0 0
    %847 = vmatpush2.bf16.msra.mxu0 0
    %848 = vmatprep.subr.bf16.mxu0 0
    %849 = vmatpush2.bf16.msra.mxu0 0
    %850 = vmatprep.subr.bf16.mxu0 0
    %851 = vmatpush2.bf16.msra.mxu0 0
    %852 = vmatprep.subr.bf16.mxu0 0
    %853 = vmatpush2.bf16.msra.mxu0 0
    %854 = vmatprep.mubr.bf16.mxu0 0
    %855 = vmatmul.mubr.bf16.gmra.mxu0 %v821
    %v856 = vpop.f32.mrf.mxu0
    %v857 = vadd.f32 0.0, %v856
    %v858 = vpop.f32.mrf.mxu0
    %v859 = vadd.f32 0.0, %v858
    %v860 = vpop.f32.mrf.mxu0
    %v861 = vpop.f32.mrf.mxu0
    %862 = vdwg.mxu0
    %863 = vmatprep.subr.bf16.mxu0 0
    %864 = vmatpush1.bf16.msra.mxu0 %v278
    %865 = vmatprep.subr.bf16.mxu0 0
    %866 = vmatpush1.bf16.msra.mxu0 %v275
    %867 = vmatprep.subr.bf16.mxu0 0
    %868 = vmatpush1.bf16.msra.mxu0 %v272
    %869 = vmatprep.subr.bf16.mxu0 0
    %870 = vmatpush1.bf16.msra.mxu0 %v269
    %871 = vmatprep.subr.bf16.mxu0 0
    %872 = vmatpush1.bf16.msra.mxu0 %v266
    %873 = vmatprep.subr.bf16.mxu0 0
    %874 = vmatpush1.bf16.msra.mxu0 %v263
    %875 = vmatprep.subr.bf16.mxu0 0
    %876 = vmatpush1.bf16.msra.mxu0 %v260
    %877 = vmatprep.subr.bf16.mxu0 0
    %878 = vmatpush1.bf16.msra.mxu0 %v257
    %879 = vmatprep.subr.bf16.mxu0 0
    %880 = vmatpush2.bf16.msra.mxu0 0
    %881 = vmatprep.subr.bf16.mxu0 0
    %882 = vmatpush2.bf16.msra.mxu0 0
    %883 = vmatprep.subr.bf16.mxu0 0
    %884 = vmatpush2.bf16.msra.mxu0 0
    %885 = vmatprep.subr.bf16.mxu0 0
    %886 = vmatpush2.bf16.msra.mxu0 0
    %887 = vmatprep.subr.bf16.mxu0 0
    %888 = vmatpush2.bf16.msra.mxu0 0
    %889 = vmatprep.subr.bf16.mxu0 0
    %890 = vmatpush2.bf16.msra.mxu0 0
    %891 = vmatprep.subr.bf16.mxu0 0
    %892 = vmatpush2.bf16.msra.mxu0 0
    %893 = vmatprep.subr.bf16.mxu0 0
    %894 = vmatpush2.bf16.msra.mxu0 0
    %895 = vmatprep.mubr.bf16.mxu0 0
    %896 = vmatmul.mubr.bf16.gmra.mxu0 %v821
    %v897 = vpop.f32.mrf.mxu0
    %v898 = vadd.f32 0.0, %v897
    %v899 = vpop.f32.mrf.mxu0
    %v900 = vpop.f32.mrf.mxu0
    %v901 = vpop.f32.mrf.mxu0
    %902 = vdwg.mxu0
    %v903 = vpack.c.bf16 %v810, %v810
    %904 = vmatprep.subr.bf16.mxu0 %v486
    %905 = vmatpush1.bf16.msra.mxu0 %v485
    %906 = vmatprep.subr.bf16.mxu0 %v483
    %907 = vmatpush1.bf16.msra.mxu0 %v482
    %908 = vmatprep.subr.bf16.mxu0 %v480
    %909 = vmatpush1.bf16.msra.mxu0 %v479
    %910 = vmatprep.subr.bf16.mxu0 %v477
    %911 = vmatpush1.bf16.msra.mxu0 %v476
    %912 = vmatprep.subr.bf16.mxu0 %v474
    %913 = vmatpush1.bf16.msra.mxu0 %v473
    %914 = vmatprep.subr.bf16.mxu0 %v471
    %915 = vmatpush1.bf16.msra.mxu0 %v470
    %916 = vmatprep.subr.bf16.mxu0 %v468
    %917 = vmatpush1.bf16.msra.mxu0 %v467
    %918 = vmatprep.subr.bf16.mxu0 %v465
    %919 = vmatpush1.bf16.msra.mxu0 %v464
    %920 = vmatprep.subr.bf16.mxu0 0
    %921 = vmatpush2.bf16.msra.mxu0 0
    %922 = vmatprep.subr.bf16.mxu0 0
    %923 = vmatpush2.bf16.msra.mxu0 0
    %924 = vmatprep.subr.bf16.mxu0 0
    %925 = vmatpush2.bf16.msra.mxu0 0
    %926 = vmatprep.subr.bf16.mxu0 0
    %927 = vmatpush2.bf16.msra.mxu0 0
    %928 = vmatprep.subr.bf16.mxu0 0
    %929 = vmatpush2.bf16.msra.mxu0 0
    %930 = vmatprep.subr.bf16.mxu0 0
    %931 = vmatpush2.bf16.msra.mxu0 0
    %932 = vmatprep.subr.bf16.mxu0 0
    %933 = vmatpush2.bf16.msra.mxu0 0
    %934 = vmatprep.subr.bf16.mxu0 0
    %935 = vmatpush2.bf16.msra.mxu0 0
    %936 = vmatprep.mubr.bf16.mxu0 0
    %937 = vmatmul.mubr.bf16.gmra.mxu0 %v903
    %v938 = vpop.f32.mrf.mxu0
    %v939 = vadd.f32 0.0, %v938
    %v940 = vpop.f32.mrf.mxu0
    %v941 = vadd.f32 0.0, %v940
    %v942 = vpop.f32.mrf.mxu0
    %v943 = vpop.f32.mrf.mxu0
    %944 = vdwg.mxu0
    %945 = vmatprep.subr.bf16.mxu0 0
    %946 = vmatpush1.bf16.msra.mxu0 %v487
    %947 = vmatprep.subr.bf16.mxu0 0
    %948 = vmatpush1.bf16.msra.mxu0 %v484
    %949 = vmatprep.subr.bf16.mxu0 0
    %950 = vmatpush1.bf16.msra.mxu0 %v481
    %951 = vmatprep.subr.bf16.mxu0 0
    %952 = vmatpush1.bf16.msra.mxu0 %v478
    %953 = vmatprep.subr.bf16.mxu0 0
    %954 = vmatpush1.bf16.msra.mxu0 %v475
    %955 = vmatprep.subr.bf16.mxu0 0
    %956 = vmatpush1.bf16.msra.mxu0 %v472
    %957 = vmatprep.subr.bf16.mxu0 0
    %958 = vmatpush1.bf16.msra.mxu0 %v469
    %959 = vmatprep.subr.bf16.mxu0 0
    %960 = vmatpush1.bf16.msra.mxu0 %v466
    %961 = vmatprep.subr.bf16.mxu0 0
    %962 = vmatpush2.bf16.msra.mxu0 0
    %963 = vmatprep.subr.bf16.mxu0 0
    %964 = vmatpush2.bf16.msra.mxu0 0
    %965 = vmatprep.subr.bf16.mxu0 0
    %966 = vmatpush2.bf16.msra.mxu0 0
    %967 = vmatprep.subr.bf16.mxu0 0
    %968 = vmatpush2.bf16.msra.mxu0 0
    %969 = vmatprep.subr.bf16.mxu0 0
    %970 = vmatpush2.bf16.msra.mxu0 0
    %971 = vmatprep.subr.bf16.mxu0 0
    %972 = vmatpush2.bf16.msra.mxu0 0
    %973 = vmatprep.subr.bf16.mxu0 0
    %974 = vmatpush2.bf16.msra.mxu0 0
    %975 = vmatprep.subr.bf16.mxu0 0
    %976 = vmatpush2.bf16.msra.mxu0 0
    %977 = vmatprep.mubr.bf16.mxu0 0
    %978 = vmatmul.mubr.bf16.gmra.mxu0 %v903
    %v979 = vpop.f32.mrf.mxu0
    %v980 = vadd.f32 0.0, %v979
    %v981 = vpop.f32.mrf.mxu0
    %v982 = vpop.f32.mrf.mxu0
    %v983 = vpop.f32.mrf.mxu0
    %984 = vdwg.mxu0
    %v985 = vadd.f32 %v857, %v939
    %v986 = vadd.f32 %v859, %v941
    %v987 = vxor.u32 %v985, 2147483648
    %v988 = vxor.u32 %v986, 2147483648
    %v989 = vmul.f32 %v987, 1.442695
    %v990 = vpow.pop %v989
    %v991 = vmul.f32 %v988, 1.442695
    %v992 = vpow.pop %v991
    %v993 = vadd.f32 %v990, 1.0
    %v994 = vadd.f32 %v992, 1.0
    %v995 = vrcp.pop %v993
    %v996 = vmul.f32 1.0, %v995
    %v997 = vrcp.pop %v994
    %v998 = vmul.f32 1.0, %v997
    %v999 = vadd.f32 %v980, %v159
    %v1000 = vmul.f32 %v996, %v999
    %v1001 = vadd.f32 %v898, %v1000
    %v1002 = vtanh.pop %v1001
    %v1003 = vsub.f32 1.0, %v998
    %v1004 = vmul.f32 %v1003, %v1002
    %v1005 = vmul.f32 %v998, %v810
    %v1006 = vadd.f32 %v1004, %v1005
    %1007 = vset.pattern.permute.xlu0 3
    %1008 = vperm.xlu0 %1007, %v89
    %v1009 = vpop.permute.xlu0 %1008
    %vm1010 = vcmp.eq.s32.totalorder %v162, %v1009
    %1011 = vset.pattern.permute.xlu0 4
    %1012 = vperm.xlu0 %1011, %v167
    %v1013 = vpop.permute.xlu0 %1012
    %vm1014 = vcmp.eq.s32.totalorder %v162, %v1013
    %vm1015 = vmor %vm1010, %vm1014
    %v1016 = vsel %vm1015, 1.0, 0.0
    %v1017 = vpack.c.bf16 %v1016, %v1016
    %1018 = vmatprep.subr.bf16.mxu0 %v277
    %1019 = vmatpush1.bf16.msra.mxu0 %v276
    %1020 = vmatprep.subr.bf16.mxu0 %v274
    %1021 = vmatpush1.bf16.msra.mxu0 %v273
    %1022 = vmatprep.subr.bf16.mxu0 %v271
    %1023 = vmatpush1.bf16.msra.mxu0 %v270
    %1024 = vmatprep.subr.bf16.mxu0 %v268
    %1025 = vmatpush1.bf16.msra.mxu0 %v267
    %1026 = vmatprep.subr.bf16.mxu0 %v265
    %1027 = vmatpush1.bf16.msra.mxu0 %v264
    %1028 = vmatprep.subr.bf16.mxu0 %v262
    %1029 = vmatpush1.bf16.msra.mxu0 %v261
    %1030 = vmatprep.subr.bf16.mxu0 %v259
    %1031 = vmatpush1.bf16.msra.mxu0 %v258
    %1032 = vmatprep.subr.bf16.mxu0 %v256
    %1033 = vmatpush1.bf16.msra.mxu0 %v255
    %1034 = vmatprep.subr.bf16.mxu0 0
    %1035 = vmatpush2.bf16.msra.mxu0 0
    %1036 = vmatprep.subr.bf16.mxu0 0
    %1037 = vmatpush2.bf16.msra.mxu0 0
    %1038 = vmatprep.subr.bf16.mxu0 0
    %1039 = vmatpush2.bf16.msra.mxu0 0
    %1040 = vmatprep.subr.bf16.mxu0 0
    %1041 = vmatpush2.bf16.msra.mxu0 0
    %1042 = vmatprep.subr.bf16.mxu0 0
    %1043 = vmatpush2.bf16.msra.mxu0 0
    %1044 = vmatprep.subr.bf16.mxu0 0
    %1045 = vmatpush2.bf16.msra.mxu0 0
    %1046 = vmatprep.subr.bf16.mxu0 0
    %1047 = vmatpush2.bf16.msra.mxu0 0
    %1048 = vmatprep.subr.bf16.mxu0 0
    %1049 = vmatpush2.bf16.msra.mxu0 0
    %1050 = vmatprep.mubr.bf16.mxu0 0
    %1051 = vmatmul.mubr.bf16.gmra.mxu0 %v1017
    %v1052 = vpop.f32.mrf.mxu0
    %v1053 = vadd.f32 0.0, %v1052
    %v1054 = vpop.f32.mrf.mxu0
    %v1055 = vadd.f32 0.0, %v1054
    %v1056 = vpop.f32.mrf.mxu0
    %v1057 = vpop.f32.mrf.mxu0
    %1058 = vdwg.mxu0
    %1059 = vmatprep.subr.bf16.mxu0 0
    %1060 = vmatpush1.bf16.msra.mxu0 %v278
    %1061 = vmatprep.subr.bf16.mxu0 0
    %1062 = vmatpush1.bf16.msra.mxu0 %v275
    %1063 = vmatprep.subr.bf16.mxu0 0
    %1064 = vmatpush1.bf16.msra.mxu0 %v272
    %1065 = vmatprep.subr.bf16.mxu0 0
    %1066 = vmatpush1.bf16.msra.mxu0 %v269
    %1067 = vmatprep.subr.bf16.mxu0 0
    %1068 = vmatpush1.bf16.msra.mxu0 %v266
    %1069 = vmatprep.subr.bf16.mxu0 0
    %1070 = vmatpush1.bf16.msra.mxu0 %v263
    %1071 = vmatprep.subr.bf16.mxu0 0
    %1072 = vmatpush1.bf16.msra.mxu0 %v260
    %1073 = vmatprep.subr.bf16.mxu0 0
    %1074 = vmatpush1.bf16.msra.mxu0 %v257
    %1075 = vmatprep.subr.bf16.mxu0 0
    %1076 = vmatpush2.bf16.msra.mxu0 0
    %1077 = vmatprep.subr.bf16.mxu0 0
    %1078 = vmatpush2.bf16.msra.mxu0 0
    %1079 = vmatprep.subr.bf16.mxu0 0
    %1080 = vmatpush2.bf16.msra.mxu0 0
    %1081 = vmatprep.subr.bf16.mxu0 0
    %1082 = vmatpush2.bf16.msra.mxu0 0
    %1083 = vmatprep.subr.bf16.mxu0 0
    %1084 = vmatpush2.bf16.msra.mxu0 0
    %1085 = vmatprep.subr.bf16.mxu0 0
    %1086 = vmatpush2.bf16.msra.mxu0 0
    %1087 = vmatprep.subr.bf16.mxu0 0
    %1088 = vmatpush2.bf16.msra.mxu0 0
    %1089 = vmatprep.subr.bf16.mxu0 0
    %1090 = vmatpush2.bf16.msra.mxu0 0
    %1091 = vmatprep.mubr.bf16.mxu0 0
    %1092 = vmatmul.mubr.bf16.gmra.mxu0 %v1017
    %v1093 = vpop.f32.mrf.mxu0
    %v1094 = vadd.f32 0.0, %v1093
    %v1095 = vpop.f32.mrf.mxu0
    %v1096 = vpop.f32.mrf.mxu0
    %v1097 = vpop.f32.mrf.mxu0
    %1098 = vdwg.mxu0
    %v1099 = vpack.c.bf16 %v1006, %v1006
    %1100 = vmatprep.subr.bf16.mxu0 %v486
    %1101 = vmatpush1.bf16.msra.mxu0 %v485
    %1102 = vmatprep.subr.bf16.mxu0 %v483
    %1103 = vmatpush1.bf16.msra.mxu0 %v482
    %1104 = vmatprep.subr.bf16.mxu0 %v480
    %1105 = vmatpush1.bf16.msra.mxu0 %v479
    %1106 = vmatprep.subr.bf16.mxu0 %v477
    %1107 = vmatpush1.bf16.msra.mxu0 %v476
    %1108 = vmatprep.subr.bf16.mxu0 %v474
    %1109 = vmatpush1.bf16.msra.mxu0 %v473
    %1110 = vmatprep.subr.bf16.mxu0 %v471
    %1111 = vmatpush1.bf16.msra.mxu0 %v470
    %1112 = vmatprep.subr.bf16.mxu0 %v468
    %1113 = vmatpush1.bf16.msra.mxu0 %v467
    %1114 = vmatprep.subr.bf16.mxu0 %v465
    %1115 = vmatpush1.bf16.msra.mxu0 %v464
    %1116 = vmatprep.subr.bf16.mxu0 0
    %1117 = vmatpush2.bf16.msra.mxu0 0
    %1118 = vmatprep.subr.bf16.mxu0 0
    %1119 = vmatpush2.bf16.msra.mxu0 0
    %1120 = vmatprep.subr.bf16.mxu0 0
    %1121 = vmatpush2.bf16.msra.mxu0 0
    %1122 = vmatprep.subr.bf16.mxu0 0
    %1123 = vmatpush2.bf16.msra.mxu0 0
    %1124 = vmatprep.subr.bf16.mxu0 0
    %1125 = vmatpush2.bf16.msra.mxu0 0
    %1126 = vmatprep.subr.bf16.mxu0 0
    %1127 = vmatpush2.bf16.msra.mxu0 0
    %1128 = vmatprep.subr.bf16.mxu0 0
    %1129 = vmatpush2.bf16.msra.mxu0 0
    %1130 = vmatprep.subr.bf16.mxu0 0
    %1131 = vmatpush2.bf16.msra.mxu0 0
    %1132 = vmatprep.mubr.bf16.mxu0 0
    %1133 = vmatmul.mubr.bf16.gmra.mxu0 %v1099
    %v1134 = vpop.f32.mrf.mxu0
    %v1135 = vadd.f32 0.0, %v1134
    %v1136 = vpop.f32.mrf.mxu0
    %v1137 = vadd.f32 0.0, %v1136
    %v1138 = vpop.f32.mrf.mxu0
    %v1139 = vpop.f32.mrf.mxu0
    %1140 = vdwg.mxu0
    %1141 = vmatprep.subr.bf16.mxu0 0
    %1142 = vmatpush1.bf16.msra.mxu0 %v487
    %1143 = vmatprep.subr.bf16.mxu0 0
    %1144 = vmatpush1.bf16.msra.mxu0 %v484
    %1145 = vmatprep.subr.bf16.mxu0 0
    %1146 = vmatpush1.bf16.msra.mxu0 %v481
    %1147 = vmatprep.subr.bf16.mxu0 0
    %1148 = vmatpush1.bf16.msra.mxu0 %v478
    %1149 = vmatprep.subr.bf16.mxu0 0
    %1150 = vmatpush1.bf16.msra.mxu0 %v475
    %1151 = vmatprep.subr.bf16.mxu0 0
    %1152 = vmatpush1.bf16.msra.mxu0 %v472
    %1153 = vmatprep.subr.bf16.mxu0 0
    %1154 = vmatpush1.bf16.msra.mxu0 %v469
    %1155 = vmatprep.subr.bf16.mxu0 0
    %1156 = vmatpush1.bf16.msra.mxu0 %v466
    %1157 = vmatprep.subr.bf16.mxu0 0
    %1158 = vmatpush2.bf16.msra.mxu0 0
    %1159 = vmatprep.subr.bf16.mxu0 0
    %1160 = vmatpush2.bf16.msra.mxu0 0
    %1161 = vmatprep.subr.bf16.mxu0 0
    %1162 = vmatpush2.bf16.msra.mxu0 0
    %1163 = vmatprep.subr.bf16.mxu0 0
    %1164 = vmatpush2.bf16.msra.mxu0 0
    %1165 = vmatprep.subr.bf16.mxu0 0
    %1166 = vmatpush2.bf16.msra.mxu0 0
    %1167 = vmatprep.subr.bf16.mxu0 0
    %1168 = vmatpush2.bf16.msra.mxu0 0
    %1169 = vmatprep.subr.bf16.mxu0 0
    %1170 = vmatpush2.bf16.msra.mxu0 0
    %1171 = vmatprep.subr.bf16.mxu0 0
    %1172 = vmatpush2.bf16.msra.mxu0 0
    %1173 = vmatprep.mubr.bf16.mxu0 0
    %1174 = vmatmul.mubr.bf16.gmra.mxu0 %v1099
    %v1175 = vpop.f32.mrf.mxu0
    %v1176 = vadd.f32 0.0, %v1175
    %v1177 = vpop.f32.mrf.mxu0
    %v1178 = vpop.f32.mrf.mxu0
    %v1179 = vpop.f32.mrf.mxu0
    %1180 = vdwg.mxu0
    %v1181 = vadd.f32 %v1053, %v1135
    %v1182 = vadd.f32 %v1055, %v1137
    %v1183 = vxor.u32 %v1181, 2147483648
    %v1184 = vxor.u32 %v1182, 2147483648
    %v1185 = vmul.f32 %v1183, 1.442695
    %v1186 = vpow.pop %v1185
    %v1187 = vmul.f32 %v1184, 1.442695
    %v1188 = vpow.pop %v1187
    %v1189 = vadd.f32 %v1186, 1.0
    %v1190 = vadd.f32 %v1188, 1.0
    %v1191 = vrcp.pop %v1189
    %v1192 = vmul.f32 1.0, %v1191
    %v1193 = vrcp.pop %v1190
    %v1194 = vmul.f32 1.0, %v1193
    %v1195 = vadd.f32 %v1176, %v159
    %v1196 = vmul.f32 %v1192, %v1195
    %v1197 = vadd.f32 %v1094, %v1196
    %v1198 = vtanh.pop %v1197
    %v1199 = vsub.f32 1.0, %v1194
    %v1200 = vmul.f32 %v1199, %v1198
    %v1201 = vmul.f32 %v1194, %v1006
    %v1202 = vadd.f32 %v1200, %v1201
    %1203 = vset.pattern.permute.xlu0 4
    %1204 = vperm.xlu0 %1203, %v89
    %v1205 = vpop.permute.xlu0 %1204
    %vm1206 = vcmp.eq.s32.totalorder %v162, %v1205
    %1207 = vset.pattern.permute.xlu0 3
    %1208 = vperm.xlu0 %1207, %v167
    %v1209 = vpop.permute.xlu0 %1208
    %vm1210 = vcmp.eq.s32.totalorder %v162, %v1209
    %vm1211 = vmor %vm1206, %vm1210
    %v1212 = vsel %vm1211, 1.0, 0.0
    %v1213 = vpack.c.bf16 %v1212, %v1212
    %1214 = vmatprep.subr.bf16.mxu0 %v277
    %1215 = vmatpush1.bf16.msra.mxu0 %v276
    %1216 = vmatprep.subr.bf16.mxu0 %v274
    %1217 = vmatpush1.bf16.msra.mxu0 %v273
    %1218 = vmatprep.subr.bf16.mxu0 %v271
    %1219 = vmatpush1.bf16.msra.mxu0 %v270
    %1220 = vmatprep.subr.bf16.mxu0 %v268
    %1221 = vmatpush1.bf16.msra.mxu0 %v267
    %1222 = vmatprep.subr.bf16.mxu0 %v265
    %1223 = vmatpush1.bf16.msra.mxu0 %v264
    %1224 = vmatprep.subr.bf16.mxu0 %v262
    %1225 = vmatpush1.bf16.msra.mxu0 %v261
    %1226 = vmatprep.subr.bf16.mxu0 %v259
    %1227 = vmatpush1.bf16.msra.mxu0 %v258
    %1228 = vmatprep.subr.bf16.mxu0 %v256
    %1229 = vmatpush1.bf16.msra.mxu0 %v255
    %1230 = vmatprep.subr.bf16.mxu0 0
    %1231 = vmatpush2.bf16.msra.mxu0 0
    %1232 = vmatprep.subr.bf16.mxu0 0
    %1233 = vmatpush2.bf16.msra.mxu0 0
    %1234 = vmatprep.subr.bf16.mxu0 0
    %1235 = vmatpush2.bf16.msra.mxu0 0
    %1236 = vmatprep.subr.bf16.mxu0 0
    %1237 = vmatpush2.bf16.msra.mxu0 0
    %1238 = vmatprep.subr.bf16.mxu0 0
    %1239 = vmatpush2.bf16.msra.mxu0 0
    %1240 = vmatprep.subr.bf16.mxu0 0
    %1241 = vmatpush2.bf16.msra.mxu0 0
    %1242 = vmatprep.subr.bf16.mxu0 0
    %1243 = vmatpush2.bf16.msra.mxu0 0
    %1244 = vmatprep.subr.bf16.mxu0 0
    %1245 = vmatpush2.bf16.msra.mxu0 0
    %1246 = vmatprep.mubr.bf16.mxu0 0
    %1247 = vmatmul.mubr.bf16.gmra.mxu0 %v1213
    %v1248 = vpop.f32.mrf.mxu0
    %v1249 = vadd.f32 0.0, %v1248
    %v1250 = vpop.f32.mrf.mxu0
    %v1251 = vadd.f32 0.0, %v1250
    %v1252 = vpop.f32.mrf.mxu0
    %v1253 = vpop.f32.mrf.mxu0
    %1254 = vdwg.mxu0
    %1255 = vmatprep.subr.bf16.mxu0 0
    %1256 = vmatpush1.bf16.msra.mxu0 %v278
    %1257 = vmatprep.subr.bf16.mxu0 0
    %1258 = vmatpush1.bf16.msra.mxu0 %v275
    %1259 = vmatprep.subr.bf16.mxu0 0
    %1260 = vmatpush1.bf16.msra.mxu0 %v272
    %1261 = vmatprep.subr.bf16.mxu0 0
    %1262 = vmatpush1.bf16.msra.mxu0 %v269
    %1263 = vmatprep.subr.bf16.mxu0 0
    %1264 = vmatpush1.bf16.msra.mxu0 %v266
    %1265 = vmatprep.subr.bf16.mxu0 0
    %1266 = vmatpush1.bf16.msra.mxu0 %v263
    %1267 = vmatprep.subr.bf16.mxu0 0
    %1268 = vmatpush1.bf16.msra.mxu0 %v260
    %1269 = vmatprep.subr.bf16.mxu0 0
    %1270 = vmatpush1.bf16.msra.mxu0 %v257
    %1271 = vmatprep.subr.bf16.mxu0 0
    %1272 = vmatpush2.bf16.msra.mxu0 0
    %1273 = vmatprep.subr.bf16.mxu0 0
    %1274 = vmatpush2.bf16.msra.mxu0 0
    %1275 = vmatprep.subr.bf16.mxu0 0
    %1276 = vmatpush2.bf16.msra.mxu0 0
    %1277 = vmatprep.subr.bf16.mxu0 0
    %1278 = vmatpush2.bf16.msra.mxu0 0
    %1279 = vmatprep.subr.bf16.mxu0 0
    %1280 = vmatpush2.bf16.msra.mxu0 0
    %1281 = vmatprep.subr.bf16.mxu0 0
    %1282 = vmatpush2.bf16.msra.mxu0 0
    %1283 = vmatprep.subr.bf16.mxu0 0
    %1284 = vmatpush2.bf16.msra.mxu0 0
    %1285 = vmatprep.subr.bf16.mxu0 0
    %1286 = vmatpush2.bf16.msra.mxu0 0
    %1287 = vmatprep.mubr.bf16.mxu0 0
    %1288 = vmatmul.mubr.bf16.gmra.mxu0 %v1213
    %v1289 = vpop.f32.mrf.mxu0
    %v1290 = vadd.f32 0.0, %v1289
    %v1291 = vpop.f32.mrf.mxu0
    %v1292 = vpop.f32.mrf.mxu0
    %v1293 = vpop.f32.mrf.mxu0
    %1294 = vdwg.mxu0
    %v1295 = vpack.c.bf16 %v1202, %v1202
    %1296 = vmatprep.subr.bf16.mxu0 %v486
    %1297 = vmatpush1.bf16.msra.mxu0 %v485
    %1298 = vmatprep.subr.bf16.mxu0 %v483
    %1299 = vmatpush1.bf16.msra.mxu0 %v482
    %1300 = vmatprep.subr.bf16.mxu0 %v480
    %1301 = vmatpush1.bf16.msra.mxu0 %v479
    %1302 = vmatprep.subr.bf16.mxu0 %v477
    %1303 = vmatpush1.bf16.msra.mxu0 %v476
    %1304 = vmatprep.subr.bf16.mxu0 %v474
    %1305 = vmatpush1.bf16.msra.mxu0 %v473
    %1306 = vmatprep.subr.bf16.mxu0 %v471
    %1307 = vmatpush1.bf16.msra.mxu0 %v470
    %1308 = vmatprep.subr.bf16.mxu0 %v468
    %1309 = vmatpush1.bf16.msra.mxu0 %v467
    %1310 = vmatprep.subr.bf16.mxu0 %v465
    %1311 = vmatpush1.bf16.msra.mxu0 %v464
    %1312 = vmatprep.subr.bf16.mxu0 0
    %1313 = vmatpush2.bf16.msra.mxu0 0
    %1314 = vmatprep.subr.bf16.mxu0 0
    %1315 = vmatpush2.bf16.msra.mxu0 0
    %1316 = vmatprep.subr.bf16.mxu0 0
    %1317 = vmatpush2.bf16.msra.mxu0 0
    %1318 = vmatprep.subr.bf16.mxu0 0
    %1319 = vmatpush2.bf16.msra.mxu0 0
    %1320 = vmatprep.subr.bf16.mxu0 0
    %1321 = vmatpush2.bf16.msra.mxu0 0
    %1322 = vmatprep.subr.bf16.mxu0 0
    %1323 = vmatpush2.bf16.msra.mxu0 0
    %1324 = vmatprep.subr.bf16.mxu0 0
    %1325 = vmatpush2.bf16.msra.mxu0 0
    %1326 = vmatprep.subr.bf16.mxu0 0
    %1327 = vmatpush2.bf16.msra.mxu0 0
    %1328 = vmatprep.mubr.bf16.mxu0 0
    %1329 = vmatmul.mubr.bf16.gmra.mxu0 %v1295
    %v1330 = vpop.f32.mrf.mxu0
    %v1331 = vadd.f32 0.0, %v1330
    %v1332 = vpop.f32.mrf.mxu0
    %v1333 = vadd.f32 0.0, %v1332
    %v1334 = vpop.f32.mrf.mxu0
    %v1335 = vpop.f32.mrf.mxu0
    %1336 = vdwg.mxu0
    %1337 = vmatprep.subr.bf16.mxu0 0
    %1338 = vmatpush1.bf16.msra.mxu0 %v487
    %1339 = vmatprep.subr.bf16.mxu0 0
    %1340 = vmatpush1.bf16.msra.mxu0 %v484
    %1341 = vmatprep.subr.bf16.mxu0 0
    %1342 = vmatpush1.bf16.msra.mxu0 %v481
    %1343 = vmatprep.subr.bf16.mxu0 0
    %1344 = vmatpush1.bf16.msra.mxu0 %v478
    %1345 = vmatprep.subr.bf16.mxu0 0
    %1346 = vmatpush1.bf16.msra.mxu0 %v475
    %1347 = vmatprep.subr.bf16.mxu0 0
    %1348 = vmatpush1.bf16.msra.mxu0 %v472
    %1349 = vmatprep.subr.bf16.mxu0 0
    %1350 = vmatpush1.bf16.msra.mxu0 %v469
    %1351 = vmatprep.subr.bf16.mxu0 0
    %1352 = vmatpush1.bf16.msra.mxu0 %v466
    %1353 = vmatprep.subr.bf16.mxu0 0
    %1354 = vmatpush2.bf16.msra.mxu0 0
    %1355 = vmatprep.subr.bf16.mxu0 0
    %1356 = vmatpush2.bf16.msra.mxu0 0
    %1357 = vmatprep.subr.bf16.mxu0 0
    %1358 = vmatpush2.bf16.msra.mxu0 0
    %1359 = vmatprep.subr.bf16.mxu0 0
    %1360 = vmatpush2.bf16.msra.mxu0 0
    %1361 = vmatprep.subr.bf16.mxu0 0
    %1362 = vmatpush2.bf16.msra.mxu0 0
    %1363 = vmatprep.subr.bf16.mxu0 0
    %1364 = vmatpush2.bf16.msra.mxu0 0
    %1365 = vmatprep.subr.bf16.mxu0 0
    %1366 = vmatpush2.bf16.msra.mxu0 0
    %1367 = vmatprep.subr.bf16.mxu0 0
    %1368 = vmatpush2.bf16.msra.mxu0 0
    %1369 = vmatprep.mubr.bf16.mxu0 0
    %1370 = vmatmul.mubr.bf16.gmra.mxu0 %v1295
    %v1371 = vpop.f32.mrf.mxu0
    %v1372 = vadd.f32 0.0, %v1371
    %v1373 = vpop.f32.mrf.mxu0
    %v1374 = vpop.f32.mrf.mxu0
    %v1375 = vpop.f32.mrf.mxu0
    %1376 = vdwg.mxu0
    %v1377 = vadd.f32 %v1249, %v1331
    %v1378 = vadd.f32 %v1251, %v1333
    %v1379 = vxor.u32 %v1377, 2147483648
    %v1380 = vxor.u32 %v1378, 2147483648
    %v1381 = vmul.f32 %v1379, 1.442695
    %v1382 = vpow.pop %v1381
    %v1383 = vmul.f32 %v1380, 1.442695
    %v1384 = vpow.pop %v1383
    %v1385 = vadd.f32 %v1382, 1.0
    %v1386 = vadd.f32 %v1384, 1.0
    %v1387 = vrcp.pop %v1385
    %v1388 = vmul.f32 1.0, %v1387
    %v1389 = vrcp.pop %v1386
    %v1390 = vmul.f32 1.0, %v1389
    %v1391 = vadd.f32 %v1372, %v159
    %v1392 = vmul.f32 %v1388, %v1391
    %v1393 = vadd.f32 %v1290, %v1392
    %v1394 = vtanh.pop %v1393
    %v1395 = vsub.f32 1.0, %v1390
    %v1396 = vmul.f32 %v1395, %v1394
    %v1397 = vmul.f32 %v1390, %v1202
    %v1398 = vadd.f32 %v1396, %v1397
    %1399 = vset.pattern.permute.xlu0 5
    %1400 = vperm.xlu0 %1399, %v89
    %v1401 = vpop.permute.xlu0 %1400
    %vm1402 = vcmp.eq.s32.totalorder %v162, %v1401
    %1403 = vset.pattern.permute.xlu0 2
    %1404 = vperm.xlu0 %1403, %v167
    %v1405 = vpop.permute.xlu0 %1404
    %vm1406 = vcmp.eq.s32.totalorder %v162, %v1405
    %vm1407 = vmor %vm1402, %vm1406
    %v1408 = vsel %vm1407, 1.0, 0.0
    %v1409 = vpack.c.bf16 %v1408, %v1408
    %1410 = vmatprep.subr.bf16.mxu0 %v277
    %1411 = vmatpush1.bf16.msra.mxu0 %v276
    %1412 = vmatprep.subr.bf16.mxu0 %v274
    %1413 = vmatpush1.bf16.msra.mxu0 %v273
    %1414 = vmatprep.subr.bf16.mxu0 %v271
    %1415 = vmatpush1.bf16.msra.mxu0 %v270
    %1416 = vmatprep.subr.bf16.mxu0 %v268
    %1417 = vmatpush1.bf16.msra.mxu0 %v267
    %1418 = vmatprep.subr.bf16.mxu0 %v265
    %1419 = vmatpush1.bf16.msra.mxu0 %v264
    %1420 = vmatprep.subr.bf16.mxu0 %v262
    %1421 = vmatpush1.bf16.msra.mxu0 %v261
    %1422 = vmatprep.subr.bf16.mxu0 %v259
    %1423 = vmatpush1.bf16.msra.mxu0 %v258
    %1424 = vmatprep.subr.bf16.mxu0 %v256
    %1425 = vmatpush1.bf16.msra.mxu0 %v255
    %1426 = vmatprep.subr.bf16.mxu0 0
    %1427 = vmatpush2.bf16.msra.mxu0 0
    %1428 = vmatprep.subr.bf16.mxu0 0
    %1429 = vmatpush2.bf16.msra.mxu0 0
    %1430 = vmatprep.subr.bf16.mxu0 0
    %1431 = vmatpush2.bf16.msra.mxu0 0
    %1432 = vmatprep.subr.bf16.mxu0 0
    %1433 = vmatpush2.bf16.msra.mxu0 0
    %1434 = vmatprep.subr.bf16.mxu0 0
    %1435 = vmatpush2.bf16.msra.mxu0 0
    %1436 = vmatprep.subr.bf16.mxu0 0
    %1437 = vmatpush2.bf16.msra.mxu0 0
    %1438 = vmatprep.subr.bf16.mxu0 0
    %1439 = vmatpush2.bf16.msra.mxu0 0
    %1440 = vmatprep.subr.bf16.mxu0 0
    %1441 = vmatpush2.bf16.msra.mxu0 0
    %1442 = vmatprep.mubr.bf16.mxu0 0
    %1443 = vmatmul.mubr.bf16.gmra.mxu0 %v1409
    %v1444 = vpop.f32.mrf.mxu0
    %v1445 = vadd.f32 0.0, %v1444
    %v1446 = vpop.f32.mrf.mxu0
    %v1447 = vadd.f32 0.0, %v1446
    %v1448 = vpop.f32.mrf.mxu0
    %v1449 = vpop.f32.mrf.mxu0
    %1450 = vdwg.mxu0
    %1451 = vmatprep.subr.bf16.mxu0 0
    %1452 = vmatpush1.bf16.msra.mxu0 %v278
    %1453 = vmatprep.subr.bf16.mxu0 0
    %1454 = vmatpush1.bf16.msra.mxu0 %v275
    %1455 = vmatprep.subr.bf16.mxu0 0
    %1456 = vmatpush1.bf16.msra.mxu0 %v272
    %1457 = vmatprep.subr.bf16.mxu0 0
    %1458 = vmatpush1.bf16.msra.mxu0 %v269
    %1459 = vmatprep.subr.bf16.mxu0 0
    %1460 = vmatpush1.bf16.msra.mxu0 %v266
    %1461 = vmatprep.subr.bf16.mxu0 0
    %1462 = vmatpush1.bf16.msra.mxu0 %v263
    %1463 = vmatprep.subr.bf16.mxu0 0
    %1464 = vmatpush1.bf16.msra.mxu0 %v260
    %1465 = vmatprep.subr.bf16.mxu0 0
    %1466 = vmatpush1.bf16.msra.mxu0 %v257
    %1467 = vmatprep.subr.bf16.mxu0 0
    %1468 = vmatpush2.bf16.msra.mxu0 0
    %1469 = vmatprep.subr.bf16.mxu0 0
    %1470 = vmatpush2.bf16.msra.mxu0 0
    %1471 = vmatprep.subr.bf16.mxu0 0
    %1472 = vmatpush2.bf16.msra.mxu0 0
    %1473 = vmatprep.subr.bf16.mxu0 0
    %1474 = vmatpush2.bf16.msra.mxu0 0
    %1475 = vmatprep.subr.bf16.mxu0 0
    %1476 = vmatpush2.bf16.msra.mxu0 0
    %1477 = vmatprep.subr.bf16.mxu0 0
    %1478 = vmatpush2.bf16.msra.mxu0 0
    %1479 = vmatprep.subr.bf16.mxu0 0
    %1480 = vmatpush2.bf16.msra.mxu0 0
    %1481 = vmatprep.subr.bf16.mxu0 0
    %1482 = vmatpush2.bf16.msra.mxu0 0
    %1483 = vmatprep.mubr.bf16.mxu0 0
    %1484 = vmatmul.mubr.bf16.gmra.mxu0 %v1409
    %v1485 = vpop.f32.mrf.mxu0
    %v1486 = vadd.f32 0.0, %v1485
    %v1487 = vpop.f32.mrf.mxu0
    %v1488 = vpop.f32.mrf.mxu0
    %v1489 = vpop.f32.mrf.mxu0
    %1490 = vdwg.mxu0
    %v1491 = vpack.c.bf16 %v1398, %v1398
    %1492 = vmatprep.subr.bf16.mxu0 %v486
    %1493 = vmatpush1.bf16.msra.mxu0 %v485
    %1494 = vmatprep.subr.bf16.mxu0 %v483
    %1495 = vmatpush1.bf16.msra.mxu0 %v482
    %1496 = vmatprep.subr.bf16.mxu0 %v480
    %1497 = vmatpush1.bf16.msra.mxu0 %v479
    %1498 = vmatprep.subr.bf16.mxu0 %v477
    %1499 = vmatpush1.bf16.msra.mxu0 %v476
    %1500 = vmatprep.subr.bf16.mxu0 %v474
    %1501 = vmatpush1.bf16.msra.mxu0 %v473
    %1502 = vmatprep.subr.bf16.mxu0 %v471
    %1503 = vmatpush1.bf16.msra.mxu0 %v470
    %1504 = vmatprep.subr.bf16.mxu0 %v468
    %1505 = vmatpush1.bf16.msra.mxu0 %v467
    %1506 = vmatprep.subr.bf16.mxu0 %v465
    %1507 = vmatpush1.bf16.msra.mxu0 %v464
    %1508 = vmatprep.subr.bf16.mxu0 0
    %1509 = vmatpush2.bf16.msra.mxu0 0
    %1510 = vmatprep.subr.bf16.mxu0 0
    %1511 = vmatpush2.bf16.msra.mxu0 0
    %1512 = vmatprep.subr.bf16.mxu0 0
    %1513 = vmatpush2.bf16.msra.mxu0 0
    %1514 = vmatprep.subr.bf16.mxu0 0
    %1515 = vmatpush2.bf16.msra.mxu0 0
    %1516 = vmatprep.subr.bf16.mxu0 0
    %1517 = vmatpush2.bf16.msra.mxu0 0
    %1518 = vmatprep.subr.bf16.mxu0 0
    %1519 = vmatpush2.bf16.msra.mxu0 0
    %1520 = vmatprep.subr.bf16.mxu0 0
    %1521 = vmatpush2.bf16.msra.mxu0 0
    %1522 = vmatprep.subr.bf16.mxu0 0
    %1523 = vmatpush2.bf16.msra.mxu0 0
    %1524 = vmatprep.mubr.bf16.mxu0 0
    %1525 = vmatmul.mubr.bf16.gmra.mxu0 %v1491
    %v1526 = vpop.f32.mrf.mxu0
    %v1527 = vadd.f32 0.0, %v1526
    %v1528 = vpop.f32.mrf.mxu0
    %v1529 = vadd.f32 0.0, %v1528
    %v1530 = vpop.f32.mrf.mxu0
    %v1531 = vpop.f32.mrf.mxu0
    %1532 = vdwg.mxu0
    %1533 = vmatprep.subr.bf16.mxu0 0
    %1534 = vmatpush1.bf16.msra.mxu0 %v487
    %1535 = vmatprep.subr.bf16.mxu0 0
    %1536 = vmatpush1.bf16.msra.mxu0 %v484
    %1537 = vmatprep.subr.bf16.mxu0 0
    %1538 = vmatpush1.bf16.msra.mxu0 %v481
    %1539 = vmatprep.subr.bf16.mxu0 0
    %1540 = vmatpush1.bf16.msra.mxu0 %v478
    %1541 = vmatprep.subr.bf16.mxu0 0
    %1542 = vmatpush1.bf16.msra.mxu0 %v475
    %1543 = vmatprep.subr.bf16.mxu0 0
    %1544 = vmatpush1.bf16.msra.mxu0 %v472
    %1545 = vmatprep.subr.bf16.mxu0 0
    %1546 = vmatpush1.bf16.msra.mxu0 %v469
    %1547 = vmatprep.subr.bf16.mxu0 0
    %1548 = vmatpush1.bf16.msra.mxu0 %v466
    %1549 = vmatprep.subr.bf16.mxu0 0
    %1550 = vmatpush2.bf16.msra.mxu0 0
    %1551 = vmatprep.subr.bf16.mxu0 0
    %1552 = vmatpush2.bf16.msra.mxu0 0
    %1553 = vmatprep.subr.bf16.mxu0 0
    %1554 = vmatpush2.bf16.msra.mxu0 0
    %1555 = vmatprep.subr.bf16.mxu0 0
    %1556 = vmatpush2.bf16.msra.mxu0 0
    %1557 = vmatprep.subr.bf16.mxu0 0
    %1558 = vmatpush2.bf16.msra.mxu0 0
    %1559 = vmatprep.subr.bf16.mxu0 0
    %1560 = vmatpush2.bf16.msra.mxu0 0
    %1561 = vmatprep.subr.bf16.mxu0 0
    %1562 = vmatpush2.bf16.msra.mxu0 0
    %1563 = vmatprep.subr.bf16.mxu0 0
    %1564 = vmatpush2.bf16.msra.mxu0 0
    %1565 = vmatprep.mubr.bf16.mxu0 0
    %1566 = vmatmul.mubr.bf16.gmra.mxu0 %v1491
    %v1567 = vpop.f32.mrf.mxu0
    %v1568 = vadd.f32 0.0, %v1567
    %v1569 = vpop.f32.mrf.mxu0
    %v1570 = vpop.f32.mrf.mxu0
    %v1571 = vpop.f32.mrf.mxu0
    %1572 = vdwg.mxu0
    %v1573 = vadd.f32 %v1445, %v1527
    %v1574 = vadd.f32 %v1447, %v1529
    %v1575 = vxor.u32 %v1573, 2147483648
    %v1576 = vxor.u32 %v1574, 2147483648
    %v1577 = vmul.f32 %v1575, 1.442695
    %v1578 = vpow.pop %v1577
    %v1579 = vmul.f32 %v1576, 1.442695
    %v1580 = vpow.pop %v1579
    %v1581 = vadd.f32 %v1578, 1.0
    %v1582 = vadd.f32 %v1580, 1.0
    %v1583 = vrcp.pop %v1581
    %v1584 = vmul.f32 1.0, %v1583
    %v1585 = vrcp.pop %v1582
    %v1586 = vmul.f32 1.0, %v1585
    %v1587 = vadd.f32 %v1568, %v159
    %v1588 = vmul.f32 %v1584, %v1587
    %v1589 = vadd.f32 %v1486, %v1588
    %v1590 = vtanh.pop %v1589
    %v1591 = vsub.f32 1.0, %v1586
    %v1592 = vmul.f32 %v1591, %v1590
    %v1593 = vmul.f32 %v1586, %v1398
    %v1594 = vadd.f32 %v1592, %v1593
    %1595 = vset.pattern.permute.xlu0 6
    %1596 = vperm.xlu0 %1595, %v89
    %v1597 = vpop.permute.xlu0 %1596
    %vm1598 = vcmp.eq.s32.totalorder %v162, %v1597
    %1599 = vset.pattern.permute.xlu0 1
    %1600 = vperm.xlu0 %1599, %v167
    %v1601 = vpop.permute.xlu0 %1600
    %vm1602 = vcmp.eq.s32.totalorder %v162, %v1601
    %vm1603 = vmor %vm1598, %vm1602
    %v1604 = vsel %vm1603, 1.0, 0.0
    %v1605 = vpack.c.bf16 %v1604, %v1604
    %1606 = vmatprep.subr.bf16.mxu0 %v277
    %1607 = vmatpush1.bf16.msra.mxu0 %v276
    %1608 = vmatprep.subr.bf16.mxu0 %v274
    %1609 = vmatpush1.bf16.msra.mxu0 %v273
    %1610 = vmatprep.subr.bf16.mxu0 %v271
    %1611 = vmatpush1.bf16.msra.mxu0 %v270
    %1612 = vmatprep.subr.bf16.mxu0 %v268
    %1613 = vmatpush1.bf16.msra.mxu0 %v267
    %1614 = vmatprep.subr.bf16.mxu0 %v265
    %1615 = vmatpush1.bf16.msra.mxu0 %v264
    %1616 = vmatprep.subr.bf16.mxu0 %v262
    %1617 = vmatpush1.bf16.msra.mxu0 %v261
    %1618 = vmatprep.subr.bf16.mxu0 %v259
    %1619 = vmatpush1.bf16.msra.mxu0 %v258
    %1620 = vmatprep.subr.bf16.mxu0 %v256
    %1621 = vmatpush1.bf16.msra.mxu0 %v255
    %1622 = vmatprep.subr.bf16.mxu0 0
    %1623 = vmatpush2.bf16.msra.mxu0 0
    %1624 = vmatprep.subr.bf16.mxu0 0
    %1625 = vmatpush2.bf16.msra.mxu0 0
    %1626 = vmatprep.subr.bf16.mxu0 0
    %1627 = vmatpush2.bf16.msra.mxu0 0
    %1628 = vmatprep.subr.bf16.mxu0 0
    %1629 = vmatpush2.bf16.msra.mxu0 0
    %1630 = vmatprep.subr.bf16.mxu0 0
    %1631 = vmatpush2.bf16.msra.mxu0 0
    %1632 = vmatprep.subr.bf16.mxu0 0
    %1633 = vmatpush2.bf16.msra.mxu0 0
    %1634 = vmatprep.subr.bf16.mxu0 0
    %1635 = vmatpush2.bf16.msra.mxu0 0
    %1636 = vmatprep.subr.bf16.mxu0 0
    %1637 = vmatpush2.bf16.msra.mxu0 0
    %1638 = vmatprep.mubr.bf16.mxu0 0
    %1639 = vmatmul.mubr.bf16.gmra.mxu0 %v1605
    %v1640 = vpop.f32.mrf.mxu0
    %v1641 = vadd.f32 0.0, %v1640
    %v1642 = vpop.f32.mrf.mxu0
    %v1643 = vadd.f32 0.0, %v1642
    %v1644 = vpop.f32.mrf.mxu0
    %v1645 = vpop.f32.mrf.mxu0
    %1646 = vdwg.mxu0
    %1647 = vmatprep.subr.bf16.mxu0 0
    %1648 = vmatpush1.bf16.msra.mxu0 %v278
    %1649 = vmatprep.subr.bf16.mxu0 0
    %1650 = vmatpush1.bf16.msra.mxu0 %v275
    %1651 = vmatprep.subr.bf16.mxu0 0
    %1652 = vmatpush1.bf16.msra.mxu0 %v272
    %1653 = vmatprep.subr.bf16.mxu0 0
    %1654 = vmatpush1.bf16.msra.mxu0 %v269
    %1655 = vmatprep.subr.bf16.mxu0 0
    %1656 = vmatpush1.bf16.msra.mxu0 %v266
    %1657 = vmatprep.subr.bf16.mxu0 0
    %1658 = vmatpush1.bf16.msra.mxu0 %v263
    %1659 = vmatprep.subr.bf16.mxu0 0
    %1660 = vmatpush1.bf16.msra.mxu0 %v260
    %1661 = vmatprep.subr.bf16.mxu0 0
    %1662 = vmatpush1.bf16.msra.mxu0 %v257
    %1663 = vmatprep.subr.bf16.mxu0 0
    %1664 = vmatpush2.bf16.msra.mxu0 0
    %1665 = vmatprep.subr.bf16.mxu0 0
    %1666 = vmatpush2.bf16.msra.mxu0 0
    %1667 = vmatprep.subr.bf16.mxu0 0
    %1668 = vmatpush2.bf16.msra.mxu0 0
    %1669 = vmatprep.subr.bf16.mxu0 0
    %1670 = vmatpush2.bf16.msra.mxu0 0
    %1671 = vmatprep.subr.bf16.mxu0 0
    %1672 = vmatpush2.bf16.msra.mxu0 0
    %1673 = vmatprep.subr.bf16.mxu0 0
    %1674 = vmatpush2.bf16.msra.mxu0 0
    %1675 = vmatprep.subr.bf16.mxu0 0
    %1676 = vmatpush2.bf16.msra.mxu0 0
    %1677 = vmatprep.subr.bf16.mxu0 0
    %1678 = vmatpush2.bf16.msra.mxu0 0
    %1679 = vmatprep.mubr.bf16.mxu0 0
    %1680 = vmatmul.mubr.bf16.gmra.mxu0 %v1605
    %v1681 = vpop.f32.mrf.mxu0
    %v1682 = vadd.f32 0.0, %v1681
    %v1683 = vpop.f32.mrf.mxu0
    %v1684 = vpop.f32.mrf.mxu0
    %v1685 = vpop.f32.mrf.mxu0
    %1686 = vdwg.mxu0
    %v1687 = vpack.c.bf16 %v1594, %v1594
    %1688 = vmatprep.subr.bf16.mxu0 %v486
    %1689 = vmatpush1.bf16.msra.mxu0 %v485
    %1690 = vmatprep.subr.bf16.mxu0 %v483
    %1691 = vmatpush1.bf16.msra.mxu0 %v482
    %1692 = vmatprep.subr.bf16.mxu0 %v480
    %1693 = vmatpush1.bf16.msra.mxu0 %v479
    %1694 = vmatprep.subr.bf16.mxu0 %v477
    %1695 = vmatpush1.bf16.msra.mxu0 %v476
    %1696 = vmatprep.subr.bf16.mxu0 %v474
    %1697 = vmatpush1.bf16.msra.mxu0 %v473
    %1698 = vmatprep.subr.bf16.mxu0 %v471
    %1699 = vmatpush1.bf16.msra.mxu0 %v470
    %1700 = vmatprep.subr.bf16.mxu0 %v468
    %1701 = vmatpush1.bf16.msra.mxu0 %v467
    %1702 = vmatprep.subr.bf16.mxu0 %v465
    %1703 = vmatpush1.bf16.msra.mxu0 %v464
    %1704 = vmatprep.subr.bf16.mxu0 0
    %1705 = vmatpush2.bf16.msra.mxu0 0
    %1706 = vmatprep.subr.bf16.mxu0 0
    %1707 = vmatpush2.bf16.msra.mxu0 0
    %1708 = vmatprep.subr.bf16.mxu0 0
    %1709 = vmatpush2.bf16.msra.mxu0 0
    %1710 = vmatprep.subr.bf16.mxu0 0
    %1711 = vmatpush2.bf16.msra.mxu0 0
    %1712 = vmatprep.subr.bf16.mxu0 0
    %1713 = vmatpush2.bf16.msra.mxu0 0
    %1714 = vmatprep.subr.bf16.mxu0 0
    %1715 = vmatpush2.bf16.msra.mxu0 0
    %1716 = vmatprep.subr.bf16.mxu0 0
    %1717 = vmatpush2.bf16.msra.mxu0 0
    %1718 = vmatprep.subr.bf16.mxu0 0
    %1719 = vmatpush2.bf16.msra.mxu0 0
    %1720 = vmatprep.mubr.bf16.mxu0 0
    %1721 = vmatmul.mubr.bf16.gmra.mxu0 %v1687
    %v1722 = vpop.f32.mrf.mxu0
    %v1723 = vadd.f32 0.0, %v1722
    %v1724 = vpop.f32.mrf.mxu0
    %v1725 = vadd.f32 0.0, %v1724
    %v1726 = vpop.f32.mrf.mxu0
    %v1727 = vpop.f32.mrf.mxu0
    %1728 = vdwg.mxu0
    %1729 = vmatprep.subr.bf16.mxu0 0
    %1730 = vmatpush1.bf16.msra.mxu0 %v487
    %1731 = vmatprep.subr.bf16.mxu0 0
    %1732 = vmatpush1.bf16.msra.mxu0 %v484
    %1733 = vmatprep.subr.bf16.mxu0 0
    %1734 = vmatpush1.bf16.msra.mxu0 %v481
    %1735 = vmatprep.subr.bf16.mxu0 0
    %1736 = vmatpush1.bf16.msra.mxu0 %v478
    %1737 = vmatprep.subr.bf16.mxu0 0
    %1738 = vmatpush1.bf16.msra.mxu0 %v475
    %1739 = vmatprep.subr.bf16.mxu0 0
    %1740 = vmatpush1.bf16.msra.mxu0 %v472
    %1741 = vmatprep.subr.bf16.mxu0 0
    %1742 = vmatpush1.bf16.msra.mxu0 %v469
    %1743 = vmatprep.subr.bf16.mxu0 0
    %1744 = vmatpush1.bf16.msra.mxu0 %v466
    %1745 = vmatprep.subr.bf16.mxu0 0
    %1746 = vmatpush2.bf16.msra.mxu0 0
    %1747 = vmatprep.subr.bf16.mxu0 0
    %1748 = vmatpush2.bf16.msra.mxu0 0
    %1749 = vmatprep.subr.bf16.mxu0 0
    %1750 = vmatpush2.bf16.msra.mxu0 0
    %1751 = vmatprep.subr.bf16.mxu0 0
    %1752 = vmatpush2.bf16.msra.mxu0 0
    %1753 = vmatprep.subr.bf16.mxu0 0
    %1754 = vmatpush2.bf16.msra.mxu0 0
    %1755 = vmatprep.subr.bf16.mxu0 0
    %1756 = vmatpush2.bf16.msra.mxu0 0
    %1757 = vmatprep.subr.bf16.mxu0 0
    %1758 = vmatpush2.bf16.msra.mxu0 0
    %1759 = vmatprep.subr.bf16.mxu0 0
    %1760 = vmatpush2.bf16.msra.mxu0 0
    %1761 = vmatprep.mubr.bf16.mxu0 0
    %1762 = vmatmul.mubr.bf16.gmra.mxu0 %v1687
    %v1763 = vpop.f32.mrf.mxu0
    %v1764 = vadd.f32 0.0, %v1763
    %v1765 = vpop.f32.mrf.mxu0
    %v1766 = vpop.f32.mrf.mxu0
    %v1767 = vpop.f32.mrf.mxu0
    %1768 = vdwg.mxu0
    %v1769 = vadd.f32 %v1641, %v1723
    %v1770 = vadd.f32 %v1643, %v1725
    %v1771 = vxor.u32 %v1769, 2147483648
    %v1772 = vxor.u32 %v1770, 2147483648
    %v1773 = vmul.f32 %v1771, 1.442695
    %v1774 = vpow.pop %v1773
    %v1775 = vmul.f32 %v1772, 1.442695
    %v1776 = vpow.pop %v1775
    %v1777 = vadd.f32 %v1774, 1.0
    %v1778 = vadd.f32 %v1776, 1.0
    %v1779 = vrcp.pop %v1777
    %v1780 = vmul.f32 1.0, %v1779
    %v1781 = vrcp.pop %v1778
    %v1782 = vmul.f32 1.0, %v1781
    %v1783 = vadd.f32 %v1764, %v159
    %v1784 = vmul.f32 %v1780, %v1783
    %v1785 = vadd.f32 %v1682, %v1784
    %v1786 = vtanh.pop %v1785
    %v1787 = vsub.f32 1.0, %v1782
    %v1788 = vmul.f32 %v1787, %v1786
    %v1789 = vmul.f32 %v1782, %v1594
    %v1790 = vadd.f32 %v1788, %v1789
    %1791 = vset.pattern.permute.xlu0 7
    %1792 = vperm.xlu0 %1791, %v89
    %v1793 = vpop.permute.xlu0 %1792
    %vm1794 = vcmp.eq.s32.totalorder %v162, %v1793
    %1795 = vset.pattern.permute.xlu0 0
    %1796 = vperm.xlu0 %1795, %v167
    %v1797 = vpop.permute.xlu0 %1796
    %vm1798 = vcmp.eq.s32.totalorder %v162, %v1797
    %vm1799 = vmor %vm1794, %vm1798
    %v1800 = vsel %vm1799, 1.0, 0.0
    %v1801 = vpack.c.bf16 %v1800, %v1800
    %1802 = vmatprep.subr.bf16.mxu0 %v277
    %1803 = vmatpush1.bf16.msra.mxu0 %v276
    %1804 = vmatprep.subr.bf16.mxu0 %v274
    %1805 = vmatpush1.bf16.msra.mxu0 %v273
    %1806 = vmatprep.subr.bf16.mxu0 %v271
    %1807 = vmatpush1.bf16.msra.mxu0 %v270
    %1808 = vmatprep.subr.bf16.mxu0 %v268
    %1809 = vmatpush1.bf16.msra.mxu0 %v267
    %1810 = vmatprep.subr.bf16.mxu0 %v265
    %1811 = vmatpush1.bf16.msra.mxu0 %v264
    %1812 = vmatprep.subr.bf16.mxu0 %v262
    %1813 = vmatpush1.bf16.msra.mxu0 %v261
    %1814 = vmatprep.subr.bf16.mxu0 %v259
    %1815 = vmatpush1.bf16.msra.mxu0 %v258
    %1816 = vmatprep.subr.bf16.mxu0 %v256
    %1817 = vmatpush1.bf16.msra.mxu0 %v255
    %1818 = vmatprep.subr.bf16.mxu0 0
    %1819 = vmatpush2.bf16.msra.mxu0 0
    %1820 = vmatprep.subr.bf16.mxu0 0
    %1821 = vmatpush2.bf16.msra.mxu0 0
    %1822 = vmatprep.subr.bf16.mxu0 0
    %1823 = vmatpush2.bf16.msra.mxu0 0
    %1824 = vmatprep.subr.bf16.mxu0 0
    %1825 = vmatpush2.bf16.msra.mxu0 0
    %1826 = vmatprep.subr.bf16.mxu0 0
    %1827 = vmatpush2.bf16.msra.mxu0 0
    %1828 = vmatprep.subr.bf16.mxu0 0
    %1829 = vmatpush2.bf16.msra.mxu0 0
    %1830 = vmatprep.subr.bf16.mxu0 0
    %1831 = vmatpush2.bf16.msra.mxu0 0
    %1832 = vmatprep.subr.bf16.mxu0 0
    %1833 = vmatpush2.bf16.msra.mxu0 0
    %1834 = vmatprep.mubr.bf16.mxu0 0
    %1835 = vmatmul.mubr.bf16.gmra.mxu0 %v1801
    %v1836 = vpop.f32.mrf.mxu0
    %v1837 = vadd.f32 0.0, %v1836
    %v1838 = vpop.f32.mrf.mxu0
    %v1839 = vadd.f32 0.0, %v1838
    %v1840 = vpop.f32.mrf.mxu0
    %v1841 = vpop.f32.mrf.mxu0
    %1842 = vdwg.mxu0
    %1843 = vmatprep.subr.bf16.mxu0 0
    %1844 = vmatpush1.bf16.msra.mxu0 %v278
    %1845 = vmatprep.subr.bf16.mxu0 0
    %1846 = vmatpush1.bf16.msra.mxu0 %v275
    %1847 = vmatprep.subr.bf16.mxu0 0
    %1848 = vmatpush1.bf16.msra.mxu0 %v272
    %1849 = vmatprep.subr.bf16.mxu0 0
    %1850 = vmatpush1.bf16.msra.mxu0 %v269
    %1851 = vmatprep.subr.bf16.mxu0 0
    %1852 = vmatpush1.bf16.msra.mxu0 %v266
    %1853 = vmatprep.subr.bf16.mxu0 0
    %1854 = vmatpush1.bf16.msra.mxu0 %v263
    %1855 = vmatprep.subr.bf16.mxu0 0
    %1856 = vmatpush1.bf16.msra.mxu0 %v260
    %1857 = vmatprep.subr.bf16.mxu0 0
    %1858 = vmatpush1.bf16.msra.mxu0 %v257
    %1859 = vmatprep.subr.bf16.mxu0 0
    %1860 = vmatpush2.bf16.msra.mxu0 0
    %1861 = vmatprep.subr.bf16.mxu0 0
    %1862 = vmatpush2.bf16.msra.mxu0 0
    %1863 = vmatprep.subr.bf16.mxu0 0
    %1864 = vmatpush2.bf16.msra.mxu0 0
    %1865 = vmatprep.subr.bf16.mxu0 0
    %1866 = vmatpush2.bf16.msra.mxu0 0
    %1867 = vmatprep.subr.bf16.mxu0 0
    %1868 = vmatpush2.bf16.msra.mxu0 0
    %1869 = vmatprep.subr.bf16.mxu0 0
    %1870 = vmatpush2.bf16.msra.mxu0 0
    %1871 = vmatprep.subr.bf16.mxu0 0
    %1872 = vmatpush2.bf16.msra.mxu0 0
    %1873 = vmatprep.subr.bf16.mxu0 0
    %1874 = vmatpush2.bf16.msra.mxu0 0
    %1875 = vmatprep.mubr.bf16.mxu0 0
    %1876 = vmatmul.mubr.bf16.gmra.mxu0 %v1801
    %v1877 = vpop.f32.mrf.mxu0
    %v1878 = vadd.f32 0.0, %v1877
    %v1879 = vpop.f32.mrf.mxu0
    %v1880 = vpop.f32.mrf.mxu0
    %v1881 = vpop.f32.mrf.mxu0
    %1882 = vdwg.mxu0
    %v1883 = vpack.c.bf16 %v1790, %v1790
    %1884 = vmatprep.subr.bf16.mxu0 %v486
    %1885 = vmatpush1.bf16.msra.mxu0 %v485
    %1886 = vmatprep.subr.bf16.mxu0 %v483
    %1887 = vmatpush1.bf16.msra.mxu0 %v482
    %1888 = vmatprep.subr.bf16.mxu0 %v480
    %1889 = vmatpush1.bf16.msra.mxu0 %v479
    %1890 = vmatprep.subr.bf16.mxu0 %v477
    %1891 = vmatpush1.bf16.msra.mxu0 %v476
    %1892 = vmatprep.subr.bf16.mxu0 %v474
    %1893 = vmatpush1.bf16.msra.mxu0 %v473
    %1894 = vmatprep.subr.bf16.mxu0 %v471
    %1895 = vmatpush1.bf16.msra.mxu0 %v470
    %1896 = vmatprep.subr.bf16.mxu0 %v468
    %1897 = vmatpush1.bf16.msra.mxu0 %v467
    %1898 = vmatprep.subr.bf16.mxu0 %v465
    %1899 = vmatpush1.bf16.msra.mxu0 %v464
    %1900 = vmatprep.subr.bf16.mxu0 0
    %1901 = vmatpush2.bf16.msra.mxu0 0
    %1902 = vmatprep.subr.bf16.mxu0 0
    %1903 = vmatpush2.bf16.msra.mxu0 0
    %1904 = vmatprep.subr.bf16.mxu0 0
    %1905 = vmatpush2.bf16.msra.mxu0 0
    %1906 = vmatprep.subr.bf16.mxu0 0
    %1907 = vmatpush2.bf16.msra.mxu0 0
    %1908 = vmatprep.subr.bf16.mxu0 0
    %1909 = vmatpush2.bf16.msra.mxu0 0
    %1910 = vmatprep.subr.bf16.mxu0 0
    %1911 = vmatpush2.bf16.msra.mxu0 0
    %1912 = vmatprep.subr.bf16.mxu0 0
    %1913 = vmatpush2.bf16.msra.mxu0 0
    %1914 = vmatprep.subr.bf16.mxu0 0
    %1915 = vmatpush2.bf16.msra.mxu0 0
    %1916 = vmatprep.mubr.bf16.mxu0 0
    %1917 = vmatmul.mubr.bf16.gmra.mxu0 %v1883
    %v1918 = vpop.f32.mrf.mxu0
    %v1919 = vadd.f32 0.0, %v1918
    %v1920 = vpop.f32.mrf.mxu0
    %v1921 = vadd.f32 0.0, %v1920
    %v1922 = vpop.f32.mrf.mxu0
    %v1923 = vpop.f32.mrf.mxu0
    %1924 = vdwg.mxu0
    %1925 = vmatprep.subr.bf16.mxu0 0
    %1926 = vmatpush1.bf16.msra.mxu0 %v487
    %1927 = vmatprep.subr.bf16.mxu0 0
    %1928 = vmatpush1.bf16.msra.mxu0 %v484
    %1929 = vmatprep.subr.bf16.mxu0 0
    %1930 = vmatpush1.bf16.msra.mxu0 %v481
    %1931 = vmatprep.subr.bf16.mxu0 0
    %1932 = vmatpush1.bf16.msra.mxu0 %v478
    %1933 = vmatprep.subr.bf16.mxu0 0
    %1934 = vmatpush1.bf16.msra.mxu0 %v475
    %1935 = vmatprep.subr.bf16.mxu0 0
    %1936 = vmatpush1.bf16.msra.mxu0 %v472
    %1937 = vmatprep.subr.bf16.mxu0 0
    %1938 = vmatpush1.bf16.msra.mxu0 %v469
    %1939 = vmatprep.subr.bf16.mxu0 0
    %1940 = vmatpush1.bf16.msra.mxu0 %v466
    %1941 = vmatprep.subr.bf16.mxu0 0
    %1942 = vmatpush2.bf16.msra.mxu0 0
    %1943 = vmatprep.subr.bf16.mxu0 0
    %1944 = vmatpush2.bf16.msra.mxu0 0
    %1945 = vmatprep.subr.bf16.mxu0 0
    %1946 = vmatpush2.bf16.msra.mxu0 0
    %1947 = vmatprep.subr.bf16.mxu0 0
    %1948 = vmatpush2.bf16.msra.mxu0 0
    %1949 = vmatprep.subr.bf16.mxu0 0
    %1950 = vmatpush2.bf16.msra.mxu0 0
    %1951 = vmatprep.subr.bf16.mxu0 0
    %1952 = vmatpush2.bf16.msra.mxu0 0
    %1953 = vmatprep.subr.bf16.mxu0 0
    %1954 = vmatpush2.bf16.msra.mxu0 0
    %1955 = vmatprep.subr.bf16.mxu0 0
    %1956 = vmatpush2.bf16.msra.mxu0 0
    %1957 = vmatprep.mubr.bf16.mxu0 0
    %1958 = vmatmul.mubr.bf16.gmra.mxu0 %v1883
    %v1959 = vpop.f32.mrf.mxu0
    %v1960 = vadd.f32 0.0, %v1959
    %v1961 = vpop.f32.mrf.mxu0
    %v1962 = vpop.f32.mrf.mxu0
    %v1963 = vpop.f32.mrf.mxu0
    %1964 = vdwg.mxu0
    %v1965 = vadd.f32 %v1837, %v1919
    %v1966 = vadd.f32 %v1839, %v1921
    %v1967 = vxor.u32 %v1965, 2147483648
    %v1968 = vxor.u32 %v1966, 2147483648
    %v1969 = vmul.f32 %v1967, 1.442695
    %v1970 = vpow.pop %v1969
    %v1971 = vmul.f32 %v1968, 1.442695
    %v1972 = vpow.pop %v1971
    %v1973 = vadd.f32 %v1970, 1.0
    %v1974 = vadd.f32 %v1972, 1.0
    %v1975 = vrcp.pop %v1973
    %v1976 = vmul.f32 1.0, %v1975
    %v1977 = vrcp.pop %v1974
    %v1978 = vmul.f32 1.0, %v1977
    %v1979 = vadd.f32 %v1960, %v159
    %v1980 = vmul.f32 %v1976, %v1979
    %v1981 = vadd.f32 %v1878, %v1980
    %v1982 = vtanh.pop %v1981
    %v1983 = vsub.f32 1.0, %v1978
    %v1984 = vmul.f32 %v1983, %v1982
    %v1985 = vmul.f32 %v1978, %v1790
    %v1986 = vadd.f32 %v1984, %v1985
    %v1987 = vpack.c.bf16 %v1986, %v1986
    %v1988 = vld [vmem:[#allocation8] sm:$0xf]
    %v1989 = vld [vmem:[#allocation8 + $0x4] sm:$0xf]
    %v1990 = vld [vmem:[#allocation8 + $0x8] sm:$0xf]
    %v1991 = vld [vmem:[#allocation8 + $0xc] sm:$0xf]
    %v1992 = vld [vmem:[#allocation8 + $0x10] sm:$0xf]
    %v1993 = vld [vmem:[#allocation8 + $0x14] sm:$0xf]
    %v1994 = vld [vmem:[#allocation8 + $0x18] sm:$0xf]
    %v1995 = vld [vmem:[#allocation8 + $0x1c] sm:$0xf]
    %v1996 = vld [vmem:[#allocation8 + $0x20] sm:$0xf]
    %v1997 = vld [vmem:[#allocation8 + $0x24] sm:$0xf]
    %v1998 = vld [vmem:[#allocation8 + $0x28] sm:$0xf]
    %v1999 = vld [vmem:[#allocation8 + $0x2c] sm:$0xf]
    %v2000 = vld [vmem:[#allocation8 + $0x30] sm:$0xf]
    %v2001 = vld [vmem:[#allocation8 + $0x34] sm:$0xf]
    %v2002 = vld [vmem:[#allocation8 + $0x38] sm:$0xf]
    %v2003 = vld [vmem:[#allocation8 + $0x3c] sm:$0xf]
    %v2004 = vld [vmem:[#allocation10] sm:$0x1]
    %v2006 = vlaneseq
    %v2007 = vshrl.u32 %v2006, 7
    %v2008 = vsub.s32 0, %v2007
    %v2009 = vrot.slane %v2004, %v2008
    %v2027 = vunpack.c.l.b16 %v1988
    %v2028 = vunpack.c.l.b16 %v1989
    %v2029 = vunpack.c.l.b16 %v1990
    %v2030 = vunpack.c.l.b16 %v1991
    %v2031 = vunpack.c.l.b16 %v1992
    %v2032 = vunpack.c.l.b16 %v1993
    %v2033 = vunpack.c.l.b16 %v1994
    %v2034 = vunpack.c.l.b16 %v1995
    %v2035 = vunpack.c.l.b16 %v1996
    %v2036 = vunpack.c.l.b16 %v1997
    %v2037 = vunpack.c.l.b16 %v1998
    %v2038 = vunpack.c.l.b16 %v1999
    %v2039 = vunpack.c.l.b16 %v2000
    %v2040 = vunpack.c.l.b16 %v2001
    %v2041 = vunpack.c.l.b16 %v2002
    %v2042 = vunpack.c.l.b16 %v2003
    %v2043 = vpack.c.b16 %v2028, %v2027
    %v2044 = vpack.c.b16 %v2030, %v2029
    %v2045 = vpack.c.b16 %v2032, %v2031
    %v2046 = vpack.c.b16 %v2034, %v2033
    %v2047 = vpack.c.b16 %v2036, %v2035
    %v2048 = vpack.c.b16 %v2038, %v2037
    %v2049 = vpack.c.b16 %v2040, %v2039
    %v2050 = vpack.c.b16 %v2042, %v2041
    %2059 = vmatprep.subr.bf16.mxu0 0
    %2060 = vmatpush1.bf16.msra.mxu0 %v2050
    %2061 = vmatprep.subr.bf16.mxu0 0
    %2062 = vmatpush1.bf16.msra.mxu0 %v2049
    %2063 = vmatprep.subr.bf16.mxu0 0
    %2064 = vmatpush1.bf16.msra.mxu0 %v2048
    %2065 = vmatprep.subr.bf16.mxu0 0
    %2066 = vmatpush1.bf16.msra.mxu0 %v2047
    %2067 = vmatprep.subr.bf16.mxu0 0
    %2068 = vmatpush1.bf16.msra.mxu0 %v2046
    %2069 = vmatprep.subr.bf16.mxu0 0
    %2070 = vmatpush1.bf16.msra.mxu0 %v2045
    %2071 = vmatprep.subr.bf16.mxu0 0
    %2072 = vmatpush1.bf16.msra.mxu0 %v2044
    %2073 = vmatprep.subr.bf16.mxu0 0
    %2074 = vmatpush1.bf16.msra.mxu0 %v2043
    %2075 = vmatprep.subr.bf16.mxu0 0
    %2076 = vmatpush2.bf16.msra.mxu0 0
    %2077 = vmatprep.subr.bf16.mxu0 0
    %2078 = vmatpush2.bf16.msra.mxu0 0
    %2079 = vmatprep.subr.bf16.mxu0 0
    %2080 = vmatpush2.bf16.msra.mxu0 0
    %2081 = vmatprep.subr.bf16.mxu0 0
    %2082 = vmatpush2.bf16.msra.mxu0 0
    %2083 = vmatprep.subr.bf16.mxu0 0
    %2084 = vmatpush2.bf16.msra.mxu0 0
    %2085 = vmatprep.subr.bf16.mxu0 0
    %2086 = vmatpush2.bf16.msra.mxu0 0
    %2087 = vmatprep.subr.bf16.mxu0 0
    %2088 = vmatpush2.bf16.msra.mxu0 0
    %2089 = vmatprep.subr.bf16.mxu0 0
    %2090 = vmatpush2.bf16.msra.mxu0 0
    %2091 = vmatprep.mubr.bf16.mxu0 0
    %2092 = vmatmul.mubr.bf16.gmra.mxu0 %v1987
    %v2093 = vpop.f32.mrf.mxu0
    %v2094 = vadd.f32 %v2009, %v2093
    %v2095 = vpop.f32.mrf.mxu0
    %v2096 = vpop.f32.mrf.mxu0
    %v2097 = vpop.f32.mrf.mxu0
    %2098 = vdwg.mxu0
    %2099 = vst [vmem:[#allocation11] sm:$0x3] %v2094
    // Predicated region
    $region46: #{rnn3_forward.1} parent=1 // pred_check
      _
    $region47: #{rnn3_forward.1} parent=1 // pred_check_branch
      %2101 = sbr.rel (0) target = $region49
    $region48: #{rnn3_forward.1} parent=1 // pred_region
      %s2103 = ssub.s32 32, 32
      %2104 = vsyncadd [#allocation4], %s2103
      %s2106 = sshll.u32 [#allocation11], 4
      %s2107 = int_to_ptr.vmem [resolvable:$true] %s2106
      %2109 = dma.vmem_to_hbm [thread:$0]  %s2107, 32, %s6, [#allocation4]
    $region49: #{rnn3_forward.1} parent=1 // pred_fallthru
      _
    // Predicated region
    $region50: #{rnn3_forward.1} parent=1 // pred_check
      _
    $region51: #{rnn3_forward.1} parent=1 // pred_check_branch
      %2111 = sbr.rel (0) target = $region53
    $region52: #{rnn3_forward.1} parent=1 // pred_region
      %2112 = dma.done [#allocation4], 32
    $region53: #{rnn3_forward.1} parent=1 // pred_fallthru
      _
    %2113 = vsyncpa [#allocation3], 1
    %2114 = vsyncpa [#allocation6], 1
    %2115 = vsyncpa [#allocation9], 1
    %2116 = vsyncpa [#allocation4], 1

</llo_original>
